<compile_context>
chip_gen: v6e
topology: v6e:2x2x1
jax: 0.10.0
libtpu: 0.0.40
codegen_flags: <defaults>
</compile_context>

<pallas_src>
import jax
import jax.numpy as jnp
from jax.experimental import pallas as pl
from jax.experimental.pallas import tpu as pltpu

IN_FEATURES = 1024
HIDDEN = 128
NUM_CLASSES = 3
PAD_CLASSES = 128                    # lane-dense packed output width
LOGIT_OFFSET = PAD_CLASSES // 2      # logits live at lanes [64, 64+NUM_CLASSES)
BN_EPS = 1e-5
LRELU_SLOPE = 0.2
NEG_MASK = -1e30                     # finite "minus infinity" for the softmax mask

assert NUM_CLASSES <= LOGIT_OFFSET   # packed lane groups must not overlap


def _round_up(v, m):
    return (v + m - 1) // m * m


def _make_kernel(batch, tile_b, sub, num_tiles):
    """Build the kernel with static batch / tiling constants closed over."""
    inv_n = 1.0 / float(batch)          # true batch size for BN statistics
    n_sub = tile_b // sub               # static, small (<= 8)
    has_ragged = (num_tiles * tile_b) != batch

    def kernel(x_ref, w1_ref, w2_ref, misc_ref, out_ref,
               h_ref, sum_ref, sq_ref, mean_ref, w2s_ref):
        t = pl.program_id(0)

        @pl.when(t == 0)
        def _init():
            sum_ref[...] = jnp.zeros_like(sum_ref)
            sq_ref[...] = jnp.zeros_like(sq_ref)

        # ----------------- phase 1: lin1 + BN statistics -------------------
        # (lin1 bias omitted: exactly cancelled by the BN mean subtraction.)
        @pl.when(t < num_tiles)
        def _phase1():
            base = pl.multiple_of(t * tile_b, 16)
            for c in range(n_sub):                       # static unroll
                r0 = c * sub
                xs = x_ref[pl.ds(r0, sub), :].astype(jnp.bfloat16)
                h = jnp.dot(xs, w1_ref[...],
                            preferred_element_type=jnp.float32)
                if has_ragged:
                    # Zero out-of-batch rows of the ragged last tile so the
                    # BN sums stay exact (padding may be garbage / NaN).
                    row = base + r0 + jax.lax.broadcasted_iota(
                        jnp.int32, (sub, 1), 0)
                    h = jnp.where(row < batch, h, 0.0)
                sum_ref[...] += jnp.sum(h, axis=0, keepdims=True)
                sq_ref[...] += jnp.sum(h * h, axis=0, keepdims=True)
                h_ref[pl.ds(base + r0, sub), :] = h.astype(h_ref.dtype)

        # ---------- once: finalize BN stats, fold into head weight ---------
        @pl.when(t == num_tiles)
        def _stats():
            mean = sum_ref[...] * inv_n                    # (1, HIDDEN)
            var = sq_ref[...] * inv_n - mean * mean        # biased (training BN)
            # TODO(synk): switch to mean-centered / Welford accumulation if
            # batch sizes or activation scales grow enough for cancellation.
            inv_std = jax.lax.rsqrt(jnp.maximum(var, 0.0) + BN_EPS)
            mean_ref[...] = mean
            # LeakyReLU(a*x) == a*LeakyReLU(x) for a>0: fold inv_std into the
            # (lane-duplicated) head weight.  One 128x128 scale + transpose.
            w2s_ref[...] = jnp.transpose(
                inv_std * w2_ref[...]).astype(jnp.bfloat16)

        # -------- phase 2: BN-normalize + LeakyReLU + head + softmax -------
        @pl.when(t >= num_tiles)
        def _phase2():
            base = pl.multiple_of((t - num_tiles) * tile_b, 16)
            mean = mean_ref[...]
            w2s = w2s_ref[...]                      # (HIDDEN, PAD_CLASSES) bf16
            b2 = misc_ref[0:1, :]                   # bias (lanes [0,3) & [64,67))
            neg = misc_ref[1:2, :]                  # additive softmax mask
            keep = misc_ref[2:3, :]                 # 1.0 on logit lanes [64,67)
            for c in range(n_sub):                  # static unroll
                r0 = c * sub
                hc = h_ref[pl.ds(base + r0, sub), :] - mean        # f32
                hc = jnp.where(hc > 0, hc, LRELU_SLOPE * hc)       # LeakyReLU
                raw = jnp.dot(hc.astype(jnp.bfloat16), w2s,
                              preferred_element_type=jnp.float32) + b2
                masked = raw + neg                  # -1e30 off the valid lanes
                m = jnp.max(masked, axis=-1, keepdims=True)
                e = jnp.exp(masked - m)             # exactly 0 on masked lanes
                probs = e * (1.0 / jnp.sum(e, axis=-1, keepdims=True))
                # pack: probs in lanes [0,3), logits in lanes [64,67)
                out_ref[pl.ds(r0, sub), :] = probs + raw * keep

    return kernel


def classifier_forward(x_in, w1, b1, w2, b2, *, tile_b=512):
    """Forward pass of _Classifier.

    x_in: any shape flattening to (B, 1024).
    w1: (128, 1024), b1: (128,)  -- b1 accepted for API parity; training-mode
        BatchNorm cancels it exactly.
    w2: (num_classes, 128), b2: (num_classes,).
    Returns (probs, logits), each (B, NUM_CLASSES).
    """
    del b1  # algebraically dead under training-mode BN (gamma=1, beta=0)

    x = jnp.asarray(x_in, jnp.float32).reshape(-1, IN_FEATURES)
    batch = x.shape[0]

    # ---- tiling: 16-row granularity (bf16 sublane pairs), default 512 ----
    tile_b = int(min(max(int(tile_b), 16), 1024))
    tile_b = min(_round_up(tile_b, 16), _round_up(batch, 16))
    # sub-chunk rows inside a tile: bounds live vregs, feeds the 256-wide MXU
    sub = tile_b
    if tile_b > 256:
        for cand in range(256, 0, -16):
            if tile_b % cand == 0:
                sub = cand
                break
        if tile_b // sub > 8:          # odd ragged tile: keep the unroll bounded
            sub = tile_b
    num_tiles = pl.cdiv(batch, tile_b)
    padded_b = num_tiles * tile_b

    # ---- host-side parameter prep (tiny, one-off) -------------------------
    w1_t = jnp.asarray(w1, jnp.float32).T.astype(jnp.bfloat16)      # (1024, 128)
    w2f = jnp.asarray(w2, jnp.float32)                              # (3, 128)
    b2f = jnp.asarray(b2, jnp.float32)                              # (3,)
    # Head weight/bias duplicated into the logit lanes [64,67): one matmul
    # yields logits in both lane groups (softmax reads [0,3)).
    w2_pk = (jnp.zeros((PAD_CLASSES, HIDDEN), jnp.float32)
             .at[:NUM_CLASSES, :].set(w2f)
             .at[LOGIT_OFFSET:LOGIT_OFFSET + NUM_CLASSES, :].set(w2f))
    misc = jnp.zeros((8, PAD_CLASSES), jnp.float32)
    misc = misc.at[0, :NUM_CLASSES].set(b2f)
    misc = misc.at[0, LOGIT_OFFSET:LOGIT_OFFSET + NUM_CLASSES].set(b2f)
    misc = misc.at[1, NUM_CLASSES:].set(NEG_MASK)                   # softmax mask
    misc = misc.at[2, LOGIT_OFFSET:LOGIT_OFFSET + NUM_CLASSES].set(1.0)

    kernel = _make_kernel(batch, tile_b, sub, num_tiles)

    # ---- VMEM budget derived from actual buffers (+ headroom) -------------
    vmem_bytes = (
        2 * tile_b * IN_FEATURES * 4        # x double buffer (f32)
        + 2 * IN_FEATURES * HIDDEN * 2      # w1 (bf16)
        + 2 * PAD_CLASSES * HIDDEN * 4      # w2 (f32)
        + 2 * 8 * PAD_CLASSES * 4           # misc
        + 2 * tile_b * PAD_CLASSES * 4      # packed output double buffer
        + padded_b * HIDDEN * 2             # resident hidden activations (bf16)
        + HIDDEN * PAD_CLASSES * 2          # inv_std-folded head weight
        + 4 * HIDDEN * 4                    # sum / sq / mean
    )
    vmem_limit = int(min(vmem_bytes + 8 * 1024 * 1024, 120 * 1024 * 1024))

    packed = pl.pallas_call(
        kernel,
        out_shape=jax.ShapeDtypeStruct((padded_b, PAD_CLASSES), jnp.float32),
        grid=(2 * num_tiles,),              # phase 1: lin1/stats, phase 2: epilogue
        in_specs=[
            pl.BlockSpec((tile_b, IN_FEATURES),
                         lambda t: (jnp.minimum(t, num_tiles - 1), 0)),
            pl.BlockSpec((IN_FEATURES, HIDDEN), lambda t: (0, 0)),   # w1 resident
            pl.BlockSpec((PAD_CLASSES, HIDDEN), lambda t: (0, 0)),   # w2 resident
            pl.BlockSpec((8, PAD_CLASSES), lambda t: (0, 0)),        # misc resident
        ],
        out_specs=pl.BlockSpec((tile_b, PAD_CLASSES),
                               lambda t: (jnp.maximum(t - num_tiles, 0), 0)),
        scratch_shapes=[
            pltpu.VMEM((padded_b, HIDDEN), jnp.bfloat16),    # resident hidden acts
            pltpu.VMEM((1, HIDDEN), jnp.float32),            # running sum
            pltpu.VMEM((1, HIDDEN), jnp.float32),            # running sum of squares
            pltpu.VMEM((1, HIDDEN), jnp.float32),            # batch mean
            pltpu.VMEM((HIDDEN, PAD_CLASSES), jnp.bfloat16), # folded head weight
        ],
        compiler_params=pltpu.CompilerParams(
            dimension_semantics=("arbitrary",),   # BN stats + phase boundary serialize
            vmem_limit_bytes=vmem_limit,
        ),
    )(x, w1_t, w2_pk, misc)

    probs = packed[:batch, :NUM_CLASSES]
    logits = packed[:batch, LOGIT_OFFSET:LOGIT_OFFSET + NUM_CLASSES]
    return probs, logits


def _reference(x_in, w1, b1, w2, b2):
    """Pure-JAX f32 reference matching the PyTorch module in training mode."""
    x = jnp.asarray(x_in, jnp.float32).reshape(-1, IN_FEATURES)
    h = x @ w1.T + b1
    mean = jnp.mean(h, axis=0, keepdims=True)
    var = jnp.mean((h - mean) ** 2, axis=0, keepdims=True)
    h = (h - mean) / jnp.sqrt(var + BN_EPS)
    h = jnp.where(h > 0, h, LRELU_SLOPE * h)
    logits = h @ w2.T + b2
    probs = jax.nn.softmax(logits, axis=-1)
    return probs, logits


if __name__ == "__main__":
    key = jax.random.PRNGKey(0)
    k_x, k_w1, k_b1, k_w2, k_b2, k_x2, k_x3 = jax.random.split(key, 7)

    # deterministic synthetic parameters (shapes from the module __init__)
    w1 = jax.random.normal(k_w1, (HIDDEN, IN_FEATURES), jnp.float32) * 0.03
    b1 = jax.random.normal(k_b1, (HIDDEN,), jnp.float32) * 0.01
    w2 = jax.random.normal(k_w2, (NUM_CLASSES, HIDDEN), jnp.float32) * 0.05
    b2 = jax.random.normal(k_b2, (NUM_CLASSES,), jnp.float32) * 0.01

    # Tolerances account for bf16 lin1 inputs, bf16 hidden scratch and bf16
    # head matmul (all with f32 accumulation).
    LOGIT_ATOL = LOGIT_RTOL = 3e-2
    PROB_ATOL = 1e-2

    def _check(out, ref):
        probs, logits = out
        probs_ref, logits_ref = ref
        n = probs_ref.shape[0]
        assert probs.shape == (n, NUM_CLASSES) and logits.shape == (n, NUM_CLASSES)
        assert jnp.allclose(logits, logits_ref, atol=LOGIT_ATOL, rtol=LOGIT_RTOL)
        assert jnp.allclose(probs, probs_ref, atol=PROB_ATOL)
        assert jnp.allclose(jnp.sum(probs, axis=-1), 1.0, atol=1e-3)

    # --- primary small case consistent with view(-1, 1024): (8, 64, 4, 4) ---
    x = jax.random.normal(k_x, (8, 64, 4, 4), dtype=jnp.float32)
    out = jax.block_until_ready(classifier_forward(x, w1, b1, w2, b2))
    _check(out, _reference(x, w1, b1, w2, b2))

    # --- multi-tile + ragged last tile (600 rows, default tile_b=512) -------
    x2 = jax.random.normal(k_x2, (600, IN_FEATURES), dtype=jnp.float32)
    out2 = jax.block_until_ready(classifier_forward(x2, w1, b1, w2, b2))
    _check(out2, _reference(x2, w1, b1, w2, b2))

    # --- explicit small tile: 3 tiles of 128 rows, ragged last tile ---------
    x3 = jax.random.normal(k_x3, (300, IN_FEATURES), dtype=jnp.float32)
    out3 = jax.block_until_ready(classifier_forward(x3, w1, b1, w2, b2, tile_b=128))
    _check(out3, _reference(x3, w1, b1, w2, b2))

    print("KERNEL_OK")
</pallas_src>

<mosaic_0001>
module attributes {stable_mosaic.version = 11 : i64} {
  func.func @kernel(%arg0: i32, %arg1: memref<16x1024xf32, #tpu.memory_space<vmem>>, %arg2: memref<1024x128xbf16, #tpu.memory_space<vmem>>, %arg3: memref<128x128xf32, #tpu.memory_space<vmem>>, %arg4: memref<8x128xf32, #tpu.memory_space<vmem>>, %arg5: memref<16x128xf32, #tpu.memory_space<vmem>>, %arg6: memref<16x128xbf16, #tpu.memory_space<vmem>>, %arg7: memref<1x128xf32, #tpu.memory_space<vmem>>, %arg8: memref<1x128xf32, #tpu.memory_space<vmem>>, %arg9: memref<1x128xf32, #tpu.memory_space<vmem>>, %arg10: memref<128x128xbf16, #tpu.memory_space<vmem>>) attributes {dimension_semantics = [#tpu.dimension_semantics<arbitrary>], iteration_bounds = array<i64: 2>, scalar_prefetch = 0 : i64, scratch_operands = 5 : i64, tpu.core_type = #tpu.core_type<tc>, window_params = [{transform_indices = @transform_0, window_bounds = array<i64: 16, 1024>}, {pipeline_mode = #tpu.pipeline_mode<synchronous>, transform_indices = @transform_1, window_bounds = array<i64: 1024, 128>}, {pipeline_mode = #tpu.pipeline_mode<synchronous>, transform_indices = @transform_2, window_bounds = array<i64: 128, 128>}, {pipeline_mode = #tpu.pipeline_mode<synchronous>, transform_indices = @transform_3, window_bounds = array<i64: 8, 128>}, {transform_indices = @transform_4, window_bounds = array<i64: 16, 128>}]} {
    %c0_i32 = arith.constant 0 : i32
    %0 = arith.cmpi eq, %arg0, %c0_i32 : i32
    %1 = arith.extui %0 : i1 to i32
    %c0_i32_0 = arith.constant 0 : i32
    %2 = arith.cmpi ne, %1, %c0_i32_0 : i32
    scf.if %2 {
      %cst = arith.constant 0.000000e+00 : f32
      %12 = vector.broadcast %cst : f32 to vector<1x128xf32>
      %c0 = arith.constant 0 : index
      %c0_6 = arith.constant 0 : index
      %13 = vector.load %arg7[%c0, %c0_6] : memref<1x128xf32, #tpu.memory_space<vmem>>, vector<1x128xf32>
      tpu.vector_store %arg7[%c0, %c0_6], %12 {strides = array<i32>} : memref<1x128xf32, #tpu.memory_space<vmem>>, vector<1x128xf32>,
      %cst_7 = arith.constant 0.000000e+00 : f32
      %14 = vector.broadcast %cst_7 : f32 to vector<1x128xf32>
      %c0_8 = arith.constant 0 : index
      %c0_9 = arith.constant 0 : index
      %15 = vector.load %arg8[%c0_8, %c0_9] : memref<1x128xf32, #tpu.memory_space<vmem>>, vector<1x128xf32>
      tpu.vector_store %arg8[%c0_8, %c0_9], %14 {strides = array<i32>} : memref<1x128xf32, #tpu.memory_space<vmem>>, vector<1x128xf32>,
    } else {
    }
    %c1_i32 = arith.constant 1 : i32
    %3 = arith.cmpi slt, %arg0, %c1_i32 : i32
    %4 = arith.extui %3 : i1 to i32
    %c0_i32_1 = arith.constant 0 : i32
    %5 = arith.cmpi ne, %4, %c0_i32_1 : i32
    scf.if %5 {
      %c16_i32 = arith.constant 16 : i32
      %12 = arith.muli %arg0, %c16_i32 : i32
      %13 = tpu.assume_multiple %12, 16 : i32
      %c0 = arith.constant 0 : index
      %c0_6 = arith.constant 0 : index
      %14 = vector.load %arg1[%c0, %c0_6] : memref<16x1024xf32, #tpu.memory_space<vmem>>, vector<16x1024xf32>
      %15 = arith.truncf %14 : vector<16x1024xf32> to vector<16x1024xbf16>
      %c0_7 = arith.constant 0 : index
      %c0_8 = arith.constant 0 : index
      %16 = vector.load %arg2[%c0_7, %c0_8] : memref<1024x128xbf16, #tpu.memory_space<vmem>>, vector<1024x128xbf16>
      %cst = arith.constant dense<0.000000e+00> : vector<16x128xf32>
      %17 = tpu.matmul %15, %16, %cst {dimension_numbers = #tpu.dot_dimension_numbers<[1], [0], [0], [1], [0, 0, 1, 1], [], []>} : vector<16x1024xbf16>, vector<1024x128xbf16>, vector<16x128xf32> -> vector<16x128xf32>
      %c0_i32_9 = arith.constant 0 : i32
      %18 = arith.addi %13, %c0_i32_9 : i32
      %19 = tpu.iota {dimensions = array<i32: 0>} : vector<16x1xi32>
      %20 = vector.broadcast %18 : i32 to vector<16x1xi32>
      %21 = arith.addi %20, %19 : vector<16x1xi32>
      %c8_i32 = arith.constant 8 : i32
      %22 = vector.broadcast %c8_i32 : i32 to vector<16x1xi32>
      %23 = arith.cmpi slt, %21, %22 : vector<16x1xi32>
      %cst_10 = arith.constant 0.000000e+00 : f32
      %24 = vector.shape_cast %23 : vector<16x1xi1> to vector<16x1xi1>
      %25 = vector.broadcast %24 : vector<16x1xi1> to vector<16x128xi1>
      %26 = vector.broadcast %cst_10 : f32 to vector<16x128xf32>
      %27 = arith.select %25, %17, %26 : vector<16x128xi1>, vector<16x128xf32>
      %c0_11 = arith.constant 0 : index
      %c0_12 = arith.constant 0 : index
      %28 = vector.load %arg7[%c0_11, %c0_12] : memref<1x128xf32, #tpu.memory_space<vmem>>, vector<1x128xf32>
      %cst_13 = arith.constant dense<0.000000e+00> : vector<128xf32>
      %29 = vector.multi_reduction <add>, %27, %cst_13 [0] : vector<16x128xf32> to vector<128xf32>
      %30 = vector.shape_cast %29 : vector<128xf32> to vector<1x128xf32>
      %31 = arith.addf %28, %30 : vector<1x128xf32>
      %c0_14 = arith.constant 0 : index
      %c0_15 = arith.constant 0 : index
      %32 = vector.load %arg7[%c0_14, %c0_15] : memref<1x128xf32, #tpu.memory_space<vmem>>, vector<1x128xf32>
      tpu.vector_store %arg7[%c0_14, %c0_15], %31 {strides = array<i32>} : memref<1x128xf32, #tpu.memory_space<vmem>>, vector<1x128xf32>,
      %c0_16 = arith.constant 0 : index
      %c0_17 = arith.constant 0 : index
      %33 = vector.load %arg8[%c0_16, %c0_17] : memref<1x128xf32, #tpu.memory_space<vmem>>, vector<1x128xf32>
      %34 = arith.mulf %27, %27 : vector<16x128xf32>
      %cst_18 = arith.constant dense<0.000000e+00> : vector<128xf32>
      %35 = vector.multi_reduction <add>, %34, %cst_18 [0] : vector<16x128xf32> to vector<128xf32>
      %36 = vector.shape_cast %35 : vector<128xf32> to vector<1x128xf32>
      %37 = arith.addf %33, %36 : vector<1x128xf32>
      %c0_19 = arith.constant 0 : index
      %c0_20 = arith.constant 0 : index
      %38 = vector.load %arg8[%c0_19, %c0_20] : memref<1x128xf32, #tpu.memory_space<vmem>>, vector<1x128xf32>
      tpu.vector_store %arg8[%c0_19, %c0_20], %37 {strides = array<i32>} : memref<1x128xf32, #tpu.memory_space<vmem>>, vector<1x128xf32>,
      %39 = arith.truncf %27 : vector<16x128xf32> to vector<16x128xbf16>
      %c0_i32_21 = arith.constant 0 : i32
      %40 = arith.addi %13, %c0_i32_21 : i32
      %41 = arith.index_cast %40 : i32 to index
      %c0_22 = arith.constant 0 : index
      %42 = vector.load %arg6[%41, %c0_22] : memref<16x128xbf16, #tpu.memory_space<vmem>>, vector<16x128xbf16>
      tpu.vector_store %arg6[%41, %c0_22], %39 {strides = array<i32>} : memref<16x128xbf16, #tpu.memory_space<vmem>>, vector<16x128xbf16>,
    } else {
    }
    %c1_i32_2 = arith.constant 1 : i32
    %6 = arith.cmpi eq, %arg0, %c1_i32_2 : i32
    %7 = arith.extui %6 : i1 to i32
    %c0_i32_3 = arith.constant 0 : i32
    %8 = arith.cmpi ne, %7, %c0_i32_3 : i32
    scf.if %8 {
      %c0 = arith.constant 0 : index
      %c0_6 = arith.constant 0 : index
      %12 = vector.load %arg7[%c0, %c0_6] : memref<1x128xf32, #tpu.memory_space<vmem>>, vector<1x128xf32>
      %cst = arith.constant 1.250000e-01 : f32
      %13 = vector.broadcast %cst : f32 to vector<1x128xf32>
      %14 = arith.mulf %12, %13 : vector<1x128xf32>
      %c0_7 = arith.constant 0 : index
      %c0_8 = arith.constant 0 : index
      %15 = vector.load %arg8[%c0_7, %c0_8] : memref<1x128xf32, #tpu.memory_space<vmem>>, vector<1x128xf32>
      %cst_9 = arith.constant 1.250000e-01 : f32
      %16 = vector.broadcast %cst_9 : f32 to vector<1x128xf32>
      %17 = arith.mulf %15, %16 : vector<1x128xf32>
      %18 = arith.mulf %14, %14 : vector<1x128xf32>
      %19 = arith.subf %17, %18 : vector<1x128xf32>
      %cst_10 = arith.constant 0.000000e+00 : f32
      %20 = vector.broadcast %cst_10 : f32 to vector<1x128xf32>
      %21 = arith.maximumf %19, %20 : vector<1x128xf32>
      %cst_11 = arith.constant 9.99999974E-6 : f32
      %22 = vector.broadcast %cst_11 : f32 to vector<1x128xf32>
      %23 = arith.addf %21, %22 : vector<1x128xf32>
      %24 = math.rsqrt %23 : vector<1x128xf32>
      %c0_12 = arith.constant 0 : index
      %c0_13 = arith.constant 0 : index
      %25 = vector.load %arg9[%c0_12, %c0_13] : memref<1x128xf32, #tpu.memory_space<vmem>>, vector<1x128xf32>
      tpu.vector_store %arg9[%c0_12, %c0_13], %14 {strides = array<i32>} : memref<1x128xf32, #tpu.memory_space<vmem>>, vector<1x128xf32>,
      %c0_14 = arith.constant 0 : index
      %c0_15 = arith.constant 0 : index
      %26 = vector.load %arg3[%c0_14, %c0_15] : memref<128x128xf32, #tpu.memory_space<vmem>>, vector<128x128xf32>
      %27 = vector.broadcast %24 : vector<1x128xf32> to vector<128x128xf32>
      %28 = arith.mulf %27, %26 : vector<128x128xf32>
      %29 = tpu.transpose %28, [1, 0] : vector<128x128xf32> -> vector<128x128xf32>
      %30 = arith.truncf %29 : vector<128x128xf32> to vector<128x128xbf16>
      %c0_16 = arith.constant 0 : index
      %c0_17 = arith.constant 0 : index
      %31 = vector.load %arg10[%c0_16, %c0_17] : memref<128x128xbf16, #tpu.memory_space<vmem>>, vector<128x128xbf16>
      tpu.vector_store %arg10[%c0_16, %c0_17], %30 {strides = array<i32>} : memref<128x128xbf16, #tpu.memory_space<vmem>>, vector<128x128xbf16>,
    } else {
    }
    %c1_i32_4 = arith.constant 1 : i32
    %9 = arith.cmpi sge, %arg0, %c1_i32_4 : i32
    %10 = arith.extui %9 : i1 to i32
    %c0_i32_5 = arith.constant 0 : i32
    %11 = arith.cmpi ne, %10, %c0_i32_5 : i32
    scf.if %11 {
      %c1_i32_6 = arith.constant 1 : i32
      %12 = arith.subi %arg0, %c1_i32_6 : i32
      %c16_i32 = arith.constant 16 : i32
      %13 = arith.muli %12, %c16_i32 : i32
      %14 = tpu.assume_multiple %13, 16 : i32
      %c0 = arith.constant 0 : index
      %c0_7 = arith.constant 0 : index
      %15 = vector.load %arg9[%c0, %c0_7] : memref<1x128xf32, #tpu.memory_space<vmem>>, vector<1x128xf32>
      %c0_8 = arith.constant 0 : index
      %c0_9 = arith.constant 0 : index
      %16 = vector.load %arg10[%c0_8, %c0_9] : memref<128x128xbf16, #tpu.memory_space<vmem>>, vector<128x128xbf16>
      %c0_10 = arith.constant 0 : index
      %c0_11 = arith.constant 0 : index
      %17 = vector.load %arg4[%c0_10, %c0_11] : memref<8x128xf32, #tpu.memory_space<vmem>>, vector<1x128xf32>
      %c1 = arith.constant 1 : index
      %c0_12 = arith.constant 0 : index
      %18 = vector.load %arg4[%c1, %c0_12] : memref<8x128xf32, #tpu.memory_space<vmem>>, vector<1x128xf32>
      %c2 = arith.constant 2 : index
      %c0_13 = arith.constant 0 : index
      %19 = vector.load %arg4[%c2, %c0_13] : memref<8x128xf32, #tpu.memory_space<vmem>>, vector<1x128xf32>
      %c0_i32_14 = arith.constant 0 : i32
      %20 = arith.addi %14, %c0_i32_14 : i32
      %21 = arith.index_cast %20 : i32 to index
      %c0_15 = arith.constant 0 : index
      %22 = vector.load %arg6[%21, %c0_15] : memref<16x128xbf16, #tpu.memory_space<vmem>>, vector<16x128xbf16>
      %23 = arith.extf %22 : vector<16x128xbf16> to vector<16x128xf32>
      %24 = vector.broadcast %15 : vector<1x128xf32> to vector<16x128xf32>
      %25 = arith.subf %23, %24 : vector<16x128xf32>
      %cst = arith.constant 0.000000e+00 : f32
      %26 = vector.broadcast %cst : f32 to vector<16x128xf32>
      %27 = arith.cmpf ogt, %25, %26 : vector<16x128xf32>
      %cst_16 = arith.constant 2.000000e-01 : f32
      %28 = vector.broadcast %cst_16 : f32 to vector<16x128xf32>
      %29 = arith.mulf %28, %25 : vector<16x128xf32>
      %30 = arith.select %27, %25, %29 : vector<16x128xi1>, vector<16x128xf32>
      %31 = arith.truncf %30 : vector<16x128xf32> to vector<16x128xbf16>
      %cst_17 = arith.constant dense<0.000000e+00> : vector<16x128xf32>
      %32 = tpu.matmul %31, %16, %cst_17 {dimension_numbers = #tpu.dot_dimension_numbers<[1], [0], [0], [1], [0, 0, 1, 1], [], []>} : vector<16x128xbf16>, vector<128x128xbf16>, vector<16x128xf32> -> vector<16x128xf32>
      %33 = vector.broadcast %17 : vector<1x128xf32> to vector<16x128xf32>
      %34 = arith.addf %32, %33 : vector<16x128xf32>
      %35 = vector.broadcast %18 : vector<1x128xf32> to vector<16x128xf32>
      %36 = arith.addf %34, %35 : vector<16x128xf32>
      %cst_18 = arith.constant dense<0xFF800000> : vector<16xf32>
      %37 = vector.multi_reduction <maximumf>, %36, %cst_18 [1] : vector<16x128xf32> to vector<16xf32>
      %38 = vector.shape_cast %37 : vector<16xf32> to vector<16x1xf32>
      %39 = vector.broadcast %38 : vector<16x1xf32> to vector<16x128xf32>
      %40 = arith.subf %36, %39 : vector<16x128xf32>
      %41 = math.exp %40 : vector<16x128xf32>
      %cst_19 = arith.constant dense<0.000000e+00> : vector<16xf32>
      %42 = vector.multi_reduction <add>, %41, %cst_19 [1] : vector<16x128xf32> to vector<16xf32>
      %43 = vector.shape_cast %42 : vector<16xf32> to vector<16x1xf32>
      %cst_20 = arith.constant 1.000000e+00 : f32
      %44 = vector.broadcast %cst_20 : f32 to vector<16x1xf32>
      %45 = arith.divf %44, %43 : vector<16x1xf32>
      %46 = vector.broadcast %45 : vector<16x1xf32> to vector<16x128xf32>
      %47 = arith.mulf %41, %46 : vector<16x128xf32>
      %48 = vector.broadcast %19 : vector<1x128xf32> to vector<16x128xf32>
      %49 = arith.mulf %34, %48 : vector<16x128xf32>
      %50 = arith.addf %47, %49 : vector<16x128xf32>
      %c0_21 = arith.constant 0 : index
      %c0_22 = arith.constant 0 : index
      %51 = vector.load %arg5[%c0_21, %c0_22] : memref<16x128xf32, #tpu.memory_space<vmem>>, vector<16x128xf32>
      tpu.vector_store %arg5[%c0_21, %c0_22], %50 {strides = array<i32>} : memref<16x128xf32, #tpu.memory_space<vmem>>, vector<16x128xf32>,
    } else {
    }
    return
  }
  func.func @transform_0(%arg0: i32) -> (i32, i32) {
    %c0_i32 = arith.constant 0 : i32
    %0 = arith.minsi %arg0, %c0_i32 : i32
    %c0_i32_0 = arith.constant 0 : i32
    %c0_i32_1 = arith.constant 0 : i32
    return %0, %c0_i32_0 : i32, i32
  }
  func.func @transform_1(%arg0: i32) -> (i32, i32) {
    %c0_i32 = arith.constant 0 : i32
    %c0_i32_0 = arith.constant 0 : i32
    %c0_i32_1 = arith.constant 0 : i32
    return %c0_i32, %c0_i32_0 : i32, i32
  }
  func.func @transform_2(%arg0: i32) -> (i32, i32) {
    %c0_i32 = arith.constant 0 : i32
    %c0_i32_0 = arith.constant 0 : i32
    %c0_i32_1 = arith.constant 0 : i32
    return %c0_i32, %c0_i32_0 : i32, i32
  }
  func.func @transform_3(%arg0: i32) -> (i32, i32) {
    %c0_i32 = arith.constant 0 : i32
    %c0_i32_0 = arith.constant 0 : i32
    %c0_i32_1 = arith.constant 0 : i32
    return %c0_i32, %c0_i32_0 : i32, i32
  }
  func.func @transform_4(%arg0: i32) -> (i32, i32) {
    %c1_i32 = arith.constant 1 : i32
    %0 = arith.subi %arg0, %c1_i32 : i32
    %c0_i32 = arith.constant 0 : i32
    %1 = arith.maxsi %0, %c0_i32 : i32
    %c0_i32_0 = arith.constant 0 : i32
    %c0_i32_1 = arith.constant 0 : i32
    return %1, %c0_i32_0 : i32, i32
  }
}

</mosaic_0001>

<llo_original>
// kernel: tpu_custom_call.1
$region0: #{tpu_custom_call.1}
  #allocation0 [shape = 'u32[]', space=smem, size = 0x4, offset = 0x4, fixed_abs, tag = 'smem constant byte address 0x4 - core index']
  #allocation1 [shape = 'u32[144,128]{1,0:T(1,128)}', space=vmem, size = 0x12000, scoped, tag = 'internal scratch']
  #allocation2 [shape = 'bf16[16,128]{1,0:T(8,128)(2,1)}', space=vmem, size = 0x1000, scoped, tag = 'scratch operand']
  #allocation3 [shape = 'f32[1,128]{1,0:T(1,128)}', space=vmem, size = 0x200, scoped, tag = 'scratch operand']
  #allocation4 [shape = 'f32[1,128]{1,0:T(1,128)}', space=vmem, size = 0x200, scoped, tag = 'scratch operand']
  #allocation5 [shape = 'f32[1,128]{1,0:T(1,128)}', space=vmem, size = 0x200, scoped, tag = 'scratch operand']
  #allocation6 [shape = 'bf16[128,128]{1,0:T(8,128)(2,1)}', space=vmem, size = 0x8000, scoped, tag = 'scratch operand']
  %s0 = inlined_call_operand.hbm [shape: f32[8,1024], index: 0, kind: input, shape index: {}]
  %s1 = inlined_call_operand.hbm [shape: bf16[1024,128], index: 1, kind: input, shape index: {}]
  %s2 = inlined_call_operand.hbm [shape: f32[128,128], index: 2, kind: input, shape index: {}]
  %s3 = inlined_call_operand.hbm [shape: f32[8,128], index: 3, kind: input, shape index: {}]
  %s4 = inlined_call_operand.hbm [shape: f32[16,128], index: 4, kind: output, shape index: {}]
  %s5 = sld [smem:[#allocation0]]
  $region81: #{tpu_custom_call.1} parent=0
    _
  %s7 = ssub.s32 1, %s5
  %s8 = scalar_select 0, %s7, %s5
  $region1: #{tpu_custom_call.1} parent=0
    #allocation7 [shape = 'u8[131072]{0}', space=vmem, size = 0x20000, scoped, tag = 'input window, operand 0']
    #allocation8 [shape = 's32[2]{0}', space=sflag, size = 0x8, scoped, tag = 'scoped memory for tpu_custom_call.1']
    #allocation9 [shape = 's32[2]{0}', space=sflag, size = 0x8, scoped, tag = 'scoped memory for tpu_custom_call.1']
    #allocation10 [shape = 'u8[262144]{0}', space=vmem, size = 0x40000, scoped, tag = 'input window, operand 1, single buffered']
    #allocation11 [shape = 's32[1]{0}', space=sflag, size = 0x4, scoped, tag = 'scoped memory for tpu_custom_call.1']
    #allocation12 [shape = 'u8[65536]{0}', space=vmem, size = 0x10000, scoped, tag = 'input window, operand 2, single buffered']
    #allocation13 [shape = 'u8[4096]{0}', space=vmem, size = 0x1000, scoped, tag = 'input window, operand 3, single buffered']
    #allocation14 [shape = 's32[1]{0}', space=sflag, size = 0x4, scoped, tag = 'scoped memory for tpu_custom_call.1']
    #allocation15 [shape = 'u8[16384]{0}', space=vmem, size = 0x4000, scoped, tag = 'output window, operand 0']
    %9 = vsyncpa [#allocation8], 0
    %s10 = scalar_lea.sflag [#allocation8], 1
    %11 = vsyncpa %s10, 0
    %12 = vsyncpa [#allocation11], 0
    %13 = vsyncpa [#allocation14], 0
    %14 = vsyncpa [#allocation9], 0
    %s15 = scalar_lea.sflag [#allocation9], 1
    %16 = vsyncpa %s15, 0
    loop: start=0, step=1, limit=4
    $region2: #{tpu_custom_call.1} parent=1 // loop_pre_header
      _
    $region3: #{tpu_custom_call.1} parent=1 // loop_header
      %s18 = sphi 0, %s22
      %p19 = scmp.ge.s32.totalorder %s18, 4
      %s32 = sphi 0, %s34
      %s35 = sphi 0, %s32
      %s36 = sphi 0, %s35
      %s52 = sphi 0, %s36
      %s56 = sphi 0, %s56
      %s58 = sphi 0, %s56
      %s59 = sphi 0, %s58
      %s73 = sphi 0, %s59
      %s77 = sphi 0, %s77
      %s79 = sphi 0, %s77
      %s80 = sphi 0, %s79
      %s94 = sphi 0, %s80
      %s98 = sphi 0, %s98
      %s100 = sphi 0, %s98
      %s101 = sphi 0, %s100
      %s115 = sphi 0, %s101
      %s127 = sphi 0, %s129
      %s130 = sphi 0, %s127
      %s131 = sphi 0, %s130
      %s147 = sphi 0, %s131
    $region4: #{tpu_custom_call.1} parent=1 // loop_header_branch
      %21 = sbr.rel (%p19) target = $region8
    $region5: #{tpu_custom_call.1} parent=1 // loop_body
      %s23 = ssub.s32 %s18, 1
      %s24 = ssub.s32 %s18, 2
      %s25 = sadd.s32 %s18, 1
      %p26 = scmp.lt.s32.totalorder %s18, 0
      %s27 = scalar_select %p26, %s18, 0
      %p28 = scmp.lt.s32.totalorder %s25, 0
      %s29 = scalar_select %p28, %s25, 0
      %s30 = ssub.s32 %s27, %s29
      %p31 = scmp.eq.s32.totalorder %s30, 0
      %s33 = sadd.s32 %s32, 1
      %s34 = scalar_select %p31, %s32, %s33
      %p37 = pneg %p31
      %p38 = scmp.eq.s32.totalorder %s18, 1
      %p39 = por %p37, %p38
      %p40 = scmp.ne.s32.totalorder %s32, %s35
      %p41 = scmp.eq.s32.totalorder %s18, 0
      %p42 = por %p40, %p41
      %p43 = scmp.ne.s32.totalorder %s32, %s35
      %p44 = scmp.eq.s32.totalorder %s23, 1
      %p45 = por %p43, %p44
      %p46 = scmp.ne.s32.totalorder %s35, %s36
      %p47 = scmp.eq.s32.totalorder %s23, 0
      %p48 = por %p46, %p47
      %p49 = scmp.ne.s32.totalorder %s35, %s36
      %p50 = scmp.eq.s32.totalorder %s24, 1
      %p51 = por %p49, %p50
      %p53 = scmp.ne.s32.totalorder %s36, %s52
      %p54 = scmp.eq.s32.totalorder %s24, 0
      %p55 = por %p53, %p54
      %s57 = sadd.s32 %s56, 1
      %p60 = scmp.eq.s32.totalorder %s18, 1
      %p61 = scmp.ne.s32.totalorder %s56, %s58
      %p62 = scmp.eq.s32.totalorder %s18, 0
      %p63 = por %p61, %p62
      %p64 = scmp.ne.s32.totalorder %s56, %s58
      %p65 = scmp.eq.s32.totalorder %s23, 1
      %p66 = por %p64, %p65
      %p67 = scmp.ne.s32.totalorder %s58, %s59
      %p68 = scmp.eq.s32.totalorder %s23, 0
      %p69 = por %p67, %p68
      %p70 = scmp.ne.s32.totalorder %s58, %s59
      %p71 = scmp.eq.s32.totalorder %s24, 1
      %p72 = por %p70, %p71
      %p74 = scmp.ne.s32.totalorder %s59, %s73
      %p75 = scmp.eq.s32.totalorder %s24, 0
      %p76 = por %p74, %p75
      %s78 = sadd.s32 %s77, 1
      %p81 = scmp.eq.s32.totalorder %s18, 1
      %p82 = scmp.ne.s32.totalorder %s77, %s79
      %p83 = scmp.eq.s32.totalorder %s18, 0
      %p84 = por %p82, %p83
      %p85 = scmp.ne.s32.totalorder %s77, %s79
      %p86 = scmp.eq.s32.totalorder %s23, 1
      %p87 = por %p85, %p86
      %p88 = scmp.ne.s32.totalorder %s79, %s80
      %p89 = scmp.eq.s32.totalorder %s23, 0
      %p90 = por %p88, %p89
      %p91 = scmp.ne.s32.totalorder %s79, %s80
      %p92 = scmp.eq.s32.totalorder %s24, 1
      %p93 = por %p91, %p92
      %p95 = scmp.ne.s32.totalorder %s80, %s94
      %p96 = scmp.eq.s32.totalorder %s24, 0
      %p97 = por %p95, %p96
      %s99 = sadd.s32 %s98, 1
      %p102 = scmp.eq.s32.totalorder %s18, 1
      %p103 = scmp.ne.s32.totalorder %s98, %s100
      %p104 = scmp.eq.s32.totalorder %s18, 0
      %p105 = por %p103, %p104
      %p106 = scmp.ne.s32.totalorder %s98, %s100
      %p107 = scmp.eq.s32.totalorder %s23, 1
      %p108 = por %p106, %p107
      %p109 = scmp.ne.s32.totalorder %s100, %s101
      %p110 = scmp.eq.s32.totalorder %s23, 0
      %p111 = por %p109, %p110
      %p112 = scmp.ne.s32.totalorder %s100, %s101
      %p113 = scmp.eq.s32.totalorder %s24, 1
      %p114 = por %p112, %p113
      %p116 = scmp.ne.s32.totalorder %s101, %s115
      %p117 = scmp.eq.s32.totalorder %s24, 0
      %p118 = por %p116, %p117
      %s119 = ssub.s32 %s18, 1
      %p120 = scmp.gt.s32.totalorder %s119, 0
      %s121 = scalar_select %p120, %s119, 0
      %s122 = ssub.s32 %s25, 1
      %p123 = scmp.gt.s32.totalorder %s122, 0
      %s124 = scalar_select %p123, %s122, 0
      %s125 = ssub.s32 %s121, %s124
      %p126 = scmp.eq.s32.totalorder %s125, 0
      %s128 = sadd.s32 %s127, 1
      %s129 = scalar_select %p126, %s127, %s128
      %p132 = pneg %p126
      %p133 = scmp.eq.s32.totalorder %s18, 1
      %p134 = por %p132, %p133
      %p135 = scmp.ne.s32.totalorder %s127, %s130
      %p136 = scmp.eq.s32.totalorder %s18, 0
      %p137 = por %p135, %p136
      %p138 = scmp.ne.s32.totalorder %s127, %s130
      %p139 = scmp.eq.s32.totalorder %s23, 1
      %p140 = por %p138, %p139
      %p141 = scmp.ne.s32.totalorder %s130, %s131
      %p142 = scmp.eq.s32.totalorder %s23, 0
      %p143 = por %p141, %p142
      %p144 = scmp.ne.s32.totalorder %s130, %s131
      %p145 = scmp.eq.s32.totalorder %s24, 1
      %p146 = por %p144, %p145
      %p148 = scmp.ne.s32.totalorder %s131, %s147
      %p149 = scmp.eq.s32.totalorder %s24, 0
      %p150 = por %p148, %p149
      %p151 = scmp.le.s32.totalorder 1, %s18
      %p152 = scmp.lt.s32.totalorder %s18, 3
      %p153 = pnand %p151, %p152
      %p154 = pneg %p153
      // Predicated region
      $region9: #{tpu_custom_call.1} parent=5 // pred_check
        _
      $region10: #{tpu_custom_call.1} parent=5 // pred_check_branch
        %156 = sbr.rel (%p153) target = $region12
      $region11: #{tpu_custom_call.1} parent=5 // pred_region
        %s157 = ssub.s32 %s18, 1
        // Predicated region
        $region13: #{tpu_custom_call.1} parent=11 // pred_check
          %p158 = pneg %p69
        $region14: #{tpu_custom_call.1} parent=11 // pred_check_branch
          %160 = sbr.rel (%p158) target = $region16
        $region15: #{tpu_custom_call.1} parent=11 // pred_region
          %s162 = ssub.s32 8192, 8192
          %163 = vsyncadd [#allocation11], %s162
          %s164 = sshll.u32 [#allocation10], 4
          %s165 = int_to_ptr.vmem [resolvable:$true] %s164
          %170 = dma.hbm_to_vmem [thread:$0]  %s1, 8192, %s165, [#allocation11], 64, 64, 4
        $region16: #{tpu_custom_call.1} parent=11 // pred_fallthru
          _
        // Predicated region
        $region17: #{tpu_custom_call.1} parent=11 // pred_check
          %p171 = pneg %p90
        $region18: #{tpu_custom_call.1} parent=11 // pred_check_branch
          %173 = sbr.rel (%p171) target = $region20
        $region19: #{tpu_custom_call.1} parent=11 // pred_region
          %s175 = ssub.s32 2048, 2048
          %176 = vsyncadd [#allocation11], %s175
          %s177 = sshll.u32 [#allocation12], 4
          %s178 = int_to_ptr.vmem [resolvable:$true] %s177
          %183 = dma.hbm_to_vmem [thread:$0]  %s2, 2048, %s178, [#allocation11], 128, 128, 8
        $region20: #{tpu_custom_call.1} parent=11 // pred_fallthru
          _
        // Predicated region
        $region21: #{tpu_custom_call.1} parent=11 // pred_check
          %p184 = pneg %p111
        $region22: #{tpu_custom_call.1} parent=11 // pred_check_branch
          %186 = sbr.rel (%p184) target = $region24
        $region23: #{tpu_custom_call.1} parent=11 // pred_region
          %s188 = ssub.s32 128, 128
          %189 = vsyncadd [#allocation14], %s188
          %s191 = sshll.u32 [#allocation13], 4
          %s192 = int_to_ptr.vmem [resolvable:$true] %s191
          %194 = dma.hbm_to_vmem [thread:$0]  %s3, 128, %s192, [#allocation14]
        $region24: #{tpu_custom_call.1} parent=11 // pred_fallthru
          _
      $region12: #{tpu_custom_call.1} parent=5 // pred_fallthru
        _
      %p195 = scmp.lt.s32.totalorder %s18, 2
      // Predicated region
      $region25: #{tpu_custom_call.1} parent=5 // pred_check
        %p196 = pneg %p195
      $region26: #{tpu_custom_call.1} parent=5 // pred_check_branch
        %198 = sbr.rel (%p196) target = $region28
      $region27: #{tpu_custom_call.1} parent=5 // pred_region
        // Predicated region
        $region29: #{tpu_custom_call.1} parent=27 // pred_check
          %p199 = pneg %p42
        $region30: #{tpu_custom_call.1} parent=27 // pred_check_branch
          %201 = sbr.rel (%p199) target = $region32
        $region31: #{tpu_custom_call.1} parent=27 // pred_region
          %s202 = sand.u32 %s32, 1
          %s203 = scalar_lea.sflag [#allocation8], %s202
          %s204 = sand.u32 %s32, 1
          %s205 = smul.addr %s204, 128
          %s206 = scalar_lea.vmem [#allocation7], %s205
          %p207 = scmp.lt.s32.totalorder %s18, 0
          %s208 = scalar_select %p207, %s18, 0
          %s209 = smul.u32 2, %s208
          %s210 = ssub.s32 1, %s209
          %s211 = smul.u32 128, %s210
          %s212 = smul.u32 %s211, 8
          %s214 = ssub.s32 2048, %s212
          %215 = vsyncadd %s203, %s214
          %p216 = scmp.ne.s32.totalorder 0, %s212
          %s217 = smul.addr %s209, 8
          %s218 = smul.addr %s217, 128
          %s219 = scalar_lea.hbm %s0, %s218
          %s220 = smul.u32 64, %s210
          %s221 = sshll.u32 %s206, 4
          %s222 = int_to_ptr.vmem [resolvable:$true] %s221
          %s223 = sshll.u32 %s220, 4
          %227 = dma.hbm_to_vmem [thread:$0]  (%p216), %s219, %s223, %s222, %s203, 1024, 1024, 64
        $region32: #{tpu_custom_call.1} parent=27 // pred_fallthru
          _
      $region28: #{tpu_custom_call.1} parent=5 // pred_fallthru
        _
      %p228 = scmp.le.s32.totalorder 1, %s18
      %p229 = scmp.lt.s32.totalorder %s18, 3
      %p230 = pnand %p228, %p229
      %p231 = pneg %p230
      // Predicated region
      $region33: #{tpu_custom_call.1} parent=5 // pred_check
        _
      $region34: #{tpu_custom_call.1} parent=5 // pred_check_branch
        %233 = sbr.rel (%p230) target = $region36
      $region35: #{tpu_custom_call.1} parent=5 // pred_region
        %s234 = ssub.s32 %s18, 1
        %s235 = sand.u32 %s35, 1
        %s236 = scalar_lea.sflag [#allocation8], %s235
        %s237 = sand.u32 %s35, 1
        %s238 = smul.addr %s237, 128
        %s239 = scalar_lea.vmem [#allocation7], %s238
        // Predicated region
        $region37: #{tpu_custom_call.1} parent=35 // pred_check
          %p240 = pneg %p48
        $region38: #{tpu_custom_call.1} parent=35 // pred_check_branch
          %242 = sbr.rel (%p240) target = $region40
        $region39: #{tpu_custom_call.1} parent=35 // pred_region
          %243 = dma.done %s236, 2048
        $region40: #{tpu_custom_call.1} parent=35 // pred_fallthru
          _
        // Predicated region
        $region41: #{tpu_custom_call.1} parent=35 // pred_check
          %p244 = pneg %p69
        $region42: #{tpu_custom_call.1} parent=35 // pred_check_branch
          %246 = sbr.rel (%p244) target = $region44
        $region43: #{tpu_custom_call.1} parent=35 // pred_region
          %247 = dma.done [#allocation11], 8192
        $region44: #{tpu_custom_call.1} parent=35 // pred_fallthru
          _
        // Predicated region
        $region45: #{tpu_custom_call.1} parent=35 // pred_check
          %p248 = pneg %p90
        $region46: #{tpu_custom_call.1} parent=35 // pred_check_branch
          %250 = sbr.rel (%p248) target = $region48
        $region47: #{tpu_custom_call.1} parent=35 // pred_region
          %251 = dma.done [#allocation11], 2048
        $region48: #{tpu_custom_call.1} parent=35 // pred_fallthru
          _
        // Predicated region
        $region49: #{tpu_custom_call.1} parent=35 // pred_check
          %p252 = pneg %p111
        $region50: #{tpu_custom_call.1} parent=35 // pred_check_branch
          %254 = sbr.rel (%p252) target = $region52
        $region51: #{tpu_custom_call.1} parent=35 // pred_region
          %255 = dma.done [#allocation14], 128
        $region52: #{tpu_custom_call.1} parent=35 // pred_fallthru
          _
        %s256 = sand.u32 %s35, 1
        %s257 = scalar_lea.sflag [#allocation8], %s256
        %s258 = sand.u32 %s35, 1
        %s259 = smul.addr %s258, 128
        %s260 = scalar_lea.vmem [#allocation7], %s259
        %p261 = pneg %p48
        %p262 = pneg %p45
        %p263 = pneg %p69
        %p264 = pneg %p66
        %p265 = pneg %p90
        %p266 = pneg %p87
        %p267 = pneg %p111
        %p268 = pneg %p108
        %p269 = pneg %p143
        %p270 = pneg %p140
        %s271 = sand.u32 %s130, 1
        %s272 = scalar_lea.sflag [#allocation9], %s271
        %s273 = sand.u32 %s130, 1
        %s274 = smul.addr %s273, 16
        %s275 = scalar_lea.vmem [#allocation15], %s274
        %p276 = scmp.lt.s32.totalorder %s23, 0
        %s277 = scalar_select %p276, %s23, 0
        %s278 = smul.u32 2, %s277
        %s279 = ssub.s32 1, %s278
        %s280 = smul.u32 128, %s279
        %s281 = smul.u32 %s280, 8
        %s282 = ssub.s32 %s23, 1
        %p283 = scmp.gt.s32.totalorder %s282, 0
        %s284 = scalar_select %p283, %s282, 0
        %s285 = smul.u32 2, %s284
        %p287 = scmp.eq.s32.totalorder %s23, 0
        // Predicated region
        $region53: #{tpu_custom_call.1} parent=35 // pred_check
          %p288 = pneg %p287
        $region54: #{tpu_custom_call.1} parent=35 // pred_check_branch
          %290 = sbr.rel (%p288) target = $region56
        $region55: #{tpu_custom_call.1} parent=35 // pred_region
          %291 = vst [vmem:[#allocation3] sm:$0x1] 0.0
          %292 = vst [vmem:[#allocation4] sm:$0x1] 0.0
        $region56: #{tpu_custom_call.1} parent=35 // pred_fallthru
          _
        %p293 = scmp.lt.s32.totalorder %s23, 1
        // Predicated region
        $region57: #{tpu_custom_call.1} parent=35 // pred_check
          %p294 = pneg %p293
        $region58: #{tpu_custom_call.1} parent=35 // pred_check_branch
          %296 = sbr.rel (%p294) target = $region60
        $region59: #{tpu_custom_call.1} parent=35 // pred_region
          %s297 = smul.u32 %s23, 16
          %v298 = vld [vmem:[%s239] sm:$0xff]
          %v299 = vld [vmem:[%s239 + $0x8] sm:$0xff]
          %v300 = vld [vmem:[%s239 + $0x10] sm:$0xff]
          %v301 = vld [vmem:[%s239 + $0x18] sm:$0xff]
          %v302 = vld [vmem:[%s239 + $0x20] sm:$0xff]
          %v303 = vld [vmem:[%s239 + $0x28] sm:$0xff]
          %v304 = vld [vmem:[%s239 + $0x30] sm:$0xff]
          %v305 = vld [vmem:[%s239 + $0x38] sm:$0xff]
          %v306 = vld [vmem:[%s239 + $0x40] sm:$0xff]
          %v307 = vld [vmem:[%s239 + $0x48] sm:$0xff]
          %v308 = vld [vmem:[%s239 + $0x50] sm:$0xff]
          %v309 = vld [vmem:[%s239 + $0x58] sm:$0xff]
          %v310 = vld [vmem:[%s239 + $0x60] sm:$0xff]
          %v311 = vld [vmem:[%s239 + $0x68] sm:$0xff]
          %v312 = vld [vmem:[%s239 + $0x70] sm:$0xff]
          %v313 = vld [vmem:[%s239 + $0x78] sm:$0xff]
          %v314 = vpack.c.bf16 %v306, %v298
          %v315 = vpack.c.bf16 %v307, %v299
          %v316 = vpack.c.bf16 %v308, %v300
          %v317 = vpack.c.bf16 %v309, %v301
          %v318 = vpack.c.bf16 %v310, %v302
          %v319 = vpack.c.bf16 %v311, %v303
          %v320 = vpack.c.bf16 %v312, %v304
          %v321 = vpack.c.bf16 %v313, %v305
          %v322 = vld [vmem:[#allocation10] sm:$0xf]
          %v323 = vld [vmem:[#allocation10 + $0x4] sm:$0xf]
          %v324 = vld [vmem:[#allocation10 + $0x8] sm:$0xf]
          %v325 = vld [vmem:[#allocation10 + $0xc] sm:$0xf]
          %v326 = vld [vmem:[#allocation10 + $0x10] sm:$0xf]
          %v327 = vld [vmem:[#allocation10 + $0x14] sm:$0xf]
          %v328 = vld [vmem:[#allocation10 + $0x18] sm:$0xf]
          %v329 = vld [vmem:[#allocation10 + $0x1c] sm:$0xf]
          %v330 = vld [vmem:[#allocation10 + $0x20] sm:$0xf]
          %v331 = vld [vmem:[#allocation10 + $0x24] sm:$0xf]
          %v332 = vld [vmem:[#allocation10 + $0x28] sm:$0xf]
          %v333 = vld [vmem:[#allocation10 + $0x2c] sm:$0xf]
          %v334 = vld [vmem:[#allocation10 + $0x30] sm:$0xf]
          %v335 = vld [vmem:[#allocation10 + $0x34] sm:$0xf]
          %v336 = vld [vmem:[#allocation10 + $0x38] sm:$0xf]
          %v337 = vld [vmem:[#allocation10 + $0x3c] sm:$0xf]
          %v338 = vld [vmem:[#allocation10 + $0x40] sm:$0xf]
          %v339 = vld [vmem:[#allocation10 + $0x44] sm:$0xf]
          %v340 = vld [vmem:[#allocation10 + $0x48] sm:$0xf]
          %v341 = vld [vmem:[#allocation10 + $0x4c] sm:$0xf]
          %v342 = vld [vmem:[#allocation10 + $0x50] sm:$0xf]
          %v343 = vld [vmem:[#allocation10 + $0x54] sm:$0xf]
          %v344 = vld [vmem:[#allocation10 + $0x58] sm:$0xf]
          %v345 = vld [vmem:[#allocation10 + $0x5c] sm:$0xf]
          %v346 = vld [vmem:[#allocation10 + $0x60] sm:$0xf]
          %v347 = vld [vmem:[#allocation10 + $0x64] sm:$0xf]
          %v348 = vld [vmem:[#allocation10 + $0x68] sm:$0xf]
          %v349 = vld [vmem:[#allocation10 + $0x6c] sm:$0xf]
          %v350 = vld [vmem:[#allocation10 + $0x70] sm:$0xf]
          %v351 = vld [vmem:[#allocation10 + $0x74] sm:$0xf]
          %v352 = vld [vmem:[#allocation10 + $0x78] sm:$0xf]
          %v353 = vld [vmem:[#allocation10 + $0x7c] sm:$0xf]
          %v354 = vld [vmem:[#allocation10 + $0x80] sm:$0xf]
          %v355 = vld [vmem:[#allocation10 + $0x84] sm:$0xf]
          %v356 = vld [vmem:[#allocation10 + $0x88] sm:$0xf]
          %v357 = vld [vmem:[#allocation10 + $0x8c] sm:$0xf]
          %v358 = vld [vmem:[#allocation10 + $0x90] sm:$0xf]
          %v359 = vld [vmem:[#allocation10 + $0x94] sm:$0xf]
          %v360 = vld [vmem:[#allocation10 + $0x98] sm:$0xf]
          %v361 = vld [vmem:[#allocation10 + $0x9c] sm:$0xf]
          %v362 = vld [vmem:[#allocation10 + $0xa0] sm:$0xf]
          %v363 = vld [vmem:[#allocation10 + $0xa4] sm:$0xf]
          %v364 = vld [vmem:[#allocation10 + $0xa8] sm:$0xf]
          %v365 = vld [vmem:[#allocation10 + $0xac] sm:$0xf]
          %v366 = vld [vmem:[#allocation10 + $0xb0] sm:$0xf]
          %v367 = vld [vmem:[#allocation10 + $0xb4] sm:$0xf]
          %v368 = vld [vmem:[#allocation10 + $0xb8] sm:$0xf]
          %v369 = vld [vmem:[#allocation10 + $0xbc] sm:$0xf]
          %v370 = vld [vmem:[#allocation10 + $0xc0] sm:$0xf]
          %v371 = vld [vmem:[#allocation10 + $0xc4] sm:$0xf]
          %v372 = vld [vmem:[#allocation10 + $0xc8] sm:$0xf]
          %v373 = vld [vmem:[#allocation10 + $0xcc] sm:$0xf]
          %v374 = vld [vmem:[#allocation10 + $0xd0] sm:$0xf]
          %v375 = vld [vmem:[#allocation10 + $0xd4] sm:$0xf]
          %v376 = vld [vmem:[#allocation10 + $0xd8] sm:$0xf]
          %v377 = vld [vmem:[#allocation10 + $0xdc] sm:$0xf]
          %v378 = vld [vmem:[#allocation10 + $0xe0] sm:$0xf]
          %v379 = vld [vmem:[#allocation10 + $0xe4] sm:$0xf]
          %v380 = vld [vmem:[#allocation10 + $0xe8] sm:$0xf]
          %v381 = vld [vmem:[#allocation10 + $0xec] sm:$0xf]
          %v382 = vld [vmem:[#allocation10 + $0xf0] sm:$0xf]
          %v383 = vld [vmem:[#allocation10 + $0xf4] sm:$0xf]
          %v384 = vld [vmem:[#allocation10 + $0xf8] sm:$0xf]
          %v385 = vld [vmem:[#allocation10 + $0xfc] sm:$0xf]
          %v386 = vld [vmem:[#allocation10 + $0x100] sm:$0xf]
          %v387 = vld [vmem:[#allocation10 + $0x104] sm:$0xf]
          %v388 = vld [vmem:[#allocation10 + $0x108] sm:$0xf]
          %v389 = vld [vmem:[#allocation10 + $0x10c] sm:$0xf]
          %v390 = vld [vmem:[#allocation10 + $0x110] sm:$0xf]
          %v391 = vld [vmem:[#allocation10 + $0x114] sm:$0xf]
          %v392 = vld [vmem:[#allocation10 + $0x118] sm:$0xf]
          %v393 = vld [vmem:[#allocation10 + $0x11c] sm:$0xf]
          %v394 = vld [vmem:[#allocation10 + $0x120] sm:$0xf]
          %v395 = vld [vmem:[#allocation10 + $0x124] sm:$0xf]
          %v396 = vld [vmem:[#allocation10 + $0x128] sm:$0xf]
          %v397 = vld [vmem:[#allocation10 + $0x12c] sm:$0xf]
          %v398 = vld [vmem:[#allocation10 + $0x130] sm:$0xf]
          %v399 = vld [vmem:[#allocation10 + $0x134] sm:$0xf]
          %v400 = vld [vmem:[#allocation10 + $0x138] sm:$0xf]
          %v401 = vld [vmem:[#allocation10 + $0x13c] sm:$0xf]
          %v402 = vld [vmem:[#allocation10 + $0x140] sm:$0xf]
          %v403 = vld [vmem:[#allocation10 + $0x144] sm:$0xf]
          %v404 = vld [vmem:[#allocation10 + $0x148] sm:$0xf]
          %v405 = vld [vmem:[#allocation10 + $0x14c] sm:$0xf]
          %v406 = vld [vmem:[#allocation10 + $0x150] sm:$0xf]
          %v407 = vld [vmem:[#allocation10 + $0x154] sm:$0xf]
          %v408 = vld [vmem:[#allocation10 + $0x158] sm:$0xf]
          %v409 = vld [vmem:[#allocation10 + $0x15c] sm:$0xf]
          %v410 = vld [vmem:[#allocation10 + $0x160] sm:$0xf]
          %v411 = vld [vmem:[#allocation10 + $0x164] sm:$0xf]
          %v412 = vld [vmem:[#allocation10 + $0x168] sm:$0xf]
          %v413 = vld [vmem:[#allocation10 + $0x16c] sm:$0xf]
          %v414 = vld [vmem:[#allocation10 + $0x170] sm:$0xf]
          %v415 = vld [vmem:[#allocation10 + $0x174] sm:$0xf]
          %v416 = vld [vmem:[#allocation10 + $0x178] sm:$0xf]
          %v417 = vld [vmem:[#allocation10 + $0x17c] sm:$0xf]
          %v418 = vld [vmem:[#allocation10 + $0x180] sm:$0xf]
          %v419 = vld [vmem:[#allocation10 + $0x184] sm:$0xf]
          %v420 = vld [vmem:[#allocation10 + $0x188] sm:$0xf]
          %v421 = vld [vmem:[#allocation10 + $0x18c] sm:$0xf]
          %v422 = vld [vmem:[#allocation10 + $0x190] sm:$0xf]
          %v423 = vld [vmem:[#allocation10 + $0x194] sm:$0xf]
          %v424 = vld [vmem:[#allocation10 + $0x198] sm:$0xf]
          %v425 = vld [vmem:[#allocation10 + $0x19c] sm:$0xf]
          %v426 = vld [vmem:[#allocation10 + $0x1a0] sm:$0xf]
          %v427 = vld [vmem:[#allocation10 + $0x1a4] sm:$0xf]
          %v428 = vld [vmem:[#allocation10 + $0x1a8] sm:$0xf]
          %v429 = vld [vmem:[#allocation10 + $0x1ac] sm:$0xf]
          %v430 = vld [vmem:[#allocation10 + $0x1b0] sm:$0xf]
          %v431 = vld [vmem:[#allocation10 + $0x1b4] sm:$0xf]
          %v432 = vld [vmem:[#allocation10 + $0x1b8] sm:$0xf]
          %v433 = vld [vmem:[#allocation10 + $0x1bc] sm:$0xf]
          %v434 = vld [vmem:[#allocation10 + $0x1c0] sm:$0xf]
          %v435 = vld [vmem:[#allocation10 + $0x1c4] sm:$0xf]
          %v436 = vld [vmem:[#allocation10 + $0x1c8] sm:$0xf]
          %v437 = vld [vmem:[#allocation10 + $0x1cc] sm:$0xf]
          %v438 = vld [vmem:[#allocation10 + $0x1d0] sm:$0xf]
          %v439 = vld [vmem:[#allocation10 + $0x1d4] sm:$0xf]
          %v440 = vld [vmem:[#allocation10 + $0x1d8] sm:$0xf]
          %v441 = vld [vmem:[#allocation10 + $0x1dc] sm:$0xf]
          %v442 = vld [vmem:[#allocation10 + $0x1e0] sm:$0xf]
          %v443 = vld [vmem:[#allocation10 + $0x1e4] sm:$0xf]
          %v444 = vld [vmem:[#allocation10 + $0x1e8] sm:$0xf]
          %v445 = vld [vmem:[#allocation10 + $0x1ec] sm:$0xf]
          %v446 = vld [vmem:[#allocation10 + $0x1f0] sm:$0xf]
          %v447 = vld [vmem:[#allocation10 + $0x1f4] sm:$0xf]
          %v448 = vld [vmem:[#allocation10 + $0x1f8] sm:$0xf]
          %v449 = vld [vmem:[#allocation10 + $0x1fc] sm:$0xf]
          %v578 = vunpack.c.l.b16 %v322
          %v579 = vunpack.c.l.b16 %v323
          %v580 = vunpack.c.l.b16 %v324
          %v581 = vunpack.c.l.b16 %v325
          %v582 = vunpack.c.l.b16 %v326
          %v583 = vunpack.c.l.b16 %v327
          %v584 = vunpack.c.l.b16 %v328
          %v585 = vunpack.c.l.b16 %v329
          %v586 = vunpack.c.l.b16 %v330
          %v587 = vunpack.c.l.b16 %v331
          %v588 = vunpack.c.l.b16 %v332
          %v589 = vunpack.c.l.b16 %v333
          %v590 = vunpack.c.l.b16 %v334
          %v591 = vunpack.c.l.b16 %v335
          %v592 = vunpack.c.l.b16 %v336
          %v593 = vunpack.c.l.b16 %v337
          %v594 = vunpack.c.l.b16 %v338
          %v595 = vunpack.c.l.b16 %v339
          %v596 = vunpack.c.l.b16 %v340
          %v597 = vunpack.c.l.b16 %v341
          %v598 = vunpack.c.l.b16 %v342
          %v599 = vunpack.c.l.b16 %v343
          %v600 = vunpack.c.l.b16 %v344
          %v601 = vunpack.c.l.b16 %v345
          %v602 = vunpack.c.l.b16 %v346
          %v603 = vunpack.c.l.b16 %v347
          %v604 = vunpack.c.l.b16 %v348
          %v605 = vunpack.c.l.b16 %v349
          %v606 = vunpack.c.l.b16 %v350
          %v607 = vunpack.c.l.b16 %v351
          %v608 = vunpack.c.l.b16 %v352
          %v609 = vunpack.c.l.b16 %v353
          %v610 = vunpack.c.l.b16 %v354
          %v611 = vunpack.c.l.b16 %v355
          %v612 = vunpack.c.l.b16 %v356
          %v613 = vunpack.c.l.b16 %v357
          %v614 = vunpack.c.l.b16 %v358
          %v615 = vunpack.c.l.b16 %v359
          %v616 = vunpack.c.l.b16 %v360
          %v617 = vunpack.c.l.b16 %v361
          %v618 = vunpack.c.l.b16 %v362
          %v619 = vunpack.c.l.b16 %v363
          %v620 = vunpack.c.l.b16 %v364
          %v621 = vunpack.c.l.b16 %v365
          %v622 = vunpack.c.l.b16 %v366
          %v623 = vunpack.c.l.b16 %v367
          %v624 = vunpack.c.l.b16 %v368
          %v625 = vunpack.c.l.b16 %v369
          %v626 = vunpack.c.l.b16 %v370
          %v627 = vunpack.c.l.b16 %v371
          %v628 = vunpack.c.l.b16 %v372
          %v629 = vunpack.c.l.b16 %v373
          %v630 = vunpack.c.l.b16 %v374
          %v631 = vunpack.c.l.b16 %v375
          %v632 = vunpack.c.l.b16 %v376
          %v633 = vunpack.c.l.b16 %v377
          %v634 = vunpack.c.l.b16 %v378
          %v635 = vunpack.c.l.b16 %v379
          %v636 = vunpack.c.l.b16 %v380
          %v637 = vunpack.c.l.b16 %v381
          %v638 = vunpack.c.l.b16 %v382
          %v639 = vunpack.c.l.b16 %v383
          %v640 = vunpack.c.l.b16 %v384
          %v641 = vunpack.c.l.b16 %v385
          %v642 = vunpack.c.l.b16 %v386
          %v643 = vunpack.c.l.b16 %v387
          %v644 = vunpack.c.l.b16 %v388
          %v645 = vunpack.c.l.b16 %v389
          %v646 = vunpack.c.l.b16 %v390
          %v647 = vunpack.c.l.b16 %v391
          %v648 = vunpack.c.l.b16 %v392
          %v649 = vunpack.c.l.b16 %v393
          %v650 = vunpack.c.l.b16 %v394
          %v651 = vunpack.c.l.b16 %v395
          %v652 = vunpack.c.l.b16 %v396
          %v653 = vunpack.c.l.b16 %v397
          %v654 = vunpack.c.l.b16 %v398
          %v655 = vunpack.c.l.b16 %v399
          %v656 = vunpack.c.l.b16 %v400
          %v657 = vunpack.c.l.b16 %v401
          %v658 = vunpack.c.l.b16 %v402
          %v659 = vunpack.c.l.b16 %v403
          %v660 = vunpack.c.l.b16 %v404
          %v661 = vunpack.c.l.b16 %v405
          %v662 = vunpack.c.l.b16 %v406
          %v663 = vunpack.c.l.b16 %v407
          %v664 = vunpack.c.l.b16 %v408
          %v665 = vunpack.c.l.b16 %v409
          %v666 = vunpack.c.l.b16 %v410
          %v667 = vunpack.c.l.b16 %v411
          %v668 = vunpack.c.l.b16 %v412
          %v669 = vunpack.c.l.b16 %v413
          %v670 = vunpack.c.l.b16 %v414
          %v671 = vunpack.c.l.b16 %v415
          %v672 = vunpack.c.l.b16 %v416
          %v673 = vunpack.c.l.b16 %v417
          %v674 = vunpack.c.l.b16 %v418
          %v675 = vunpack.c.l.b16 %v419
          %v676 = vunpack.c.l.b16 %v420
          %v677 = vunpack.c.l.b16 %v421
          %v678 = vunpack.c.l.b16 %v422
          %v679 = vunpack.c.l.b16 %v423
          %v680 = vunpack.c.l.b16 %v424
          %v681 = vunpack.c.l.b16 %v425
          %v682 = vunpack.c.l.b16 %v426
          %v683 = vunpack.c.l.b16 %v427
          %v684 = vunpack.c.l.b16 %v428
          %v685 = vunpack.c.l.b16 %v429
          %v686 = vunpack.c.l.b16 %v430
          %v687 = vunpack.c.l.b16 %v431
          %v688 = vunpack.c.l.b16 %v432
          %v689 = vunpack.c.l.b16 %v433
          %v690 = vunpack.c.l.b16 %v434
          %v691 = vunpack.c.l.b16 %v435
          %v692 = vunpack.c.l.b16 %v436
          %v693 = vunpack.c.l.b16 %v437
          %v694 = vunpack.c.l.b16 %v438
          %v695 = vunpack.c.l.b16 %v439
          %v696 = vunpack.c.l.b16 %v440
          %v697 = vunpack.c.l.b16 %v441
          %v698 = vunpack.c.l.b16 %v442
          %v699 = vunpack.c.l.b16 %v443
          %v700 = vunpack.c.l.b16 %v444
          %v701 = vunpack.c.l.b16 %v445
          %v702 = vunpack.c.l.b16 %v446
          %v703 = vunpack.c.l.b16 %v447
          %v704 = vunpack.c.l.b16 %v448
          %v705 = vunpack.c.l.b16 %v449
          %v706 = vpack.c.b16 %v579, %v578
          %v707 = vpack.c.b16 %v581, %v580
          %v708 = vpack.c.b16 %v583, %v582
          %v709 = vpack.c.b16 %v585, %v584
          %v710 = vpack.c.b16 %v587, %v586
          %v711 = vpack.c.b16 %v589, %v588
          %v712 = vpack.c.b16 %v591, %v590
          %v713 = vpack.c.b16 %v593, %v592
          %v714 = vpack.c.b16 %v595, %v594
          %v715 = vpack.c.b16 %v597, %v596
          %v716 = vpack.c.b16 %v599, %v598
          %v717 = vpack.c.b16 %v601, %v600
          %v718 = vpack.c.b16 %v603, %v602
          %v719 = vpack.c.b16 %v605, %v604
          %v720 = vpack.c.b16 %v607, %v606
          %v721 = vpack.c.b16 %v609, %v608
          %v722 = vpack.c.b16 %v611, %v610
          %v723 = vpack.c.b16 %v613, %v612
          %v724 = vpack.c.b16 %v615, %v614
          %v725 = vpack.c.b16 %v617, %v616
          %v726 = vpack.c.b16 %v619, %v618
          %v727 = vpack.c.b16 %v621, %v620
          %v728 = vpack.c.b16 %v623, %v622
          %v729 = vpack.c.b16 %v625, %v624
          %v730 = vpack.c.b16 %v627, %v626
          %v731 = vpack.c.b16 %v629, %v628
          %v732 = vpack.c.b16 %v631, %v630
          %v733 = vpack.c.b16 %v633, %v632
          %v734 = vpack.c.b16 %v635, %v634
          %v735 = vpack.c.b16 %v637, %v636
          %v736 = vpack.c.b16 %v639, %v638
          %v737 = vpack.c.b16 %v641, %v640
          %v738 = vpack.c.b16 %v643, %v642
          %v739 = vpack.c.b16 %v645, %v644
          %v740 = vpack.c.b16 %v647, %v646
          %v741 = vpack.c.b16 %v649, %v648
          %v742 = vpack.c.b16 %v651, %v650
          %v743 = vpack.c.b16 %v653, %v652
          %v744 = vpack.c.b16 %v655, %v654
          %v745 = vpack.c.b16 %v657, %v656
          %v746 = vpack.c.b16 %v659, %v658
          %v747 = vpack.c.b16 %v661, %v660
          %v748 = vpack.c.b16 %v663, %v662
          %v749 = vpack.c.b16 %v665, %v664
          %v750 = vpack.c.b16 %v667, %v666
          %v751 = vpack.c.b16 %v669, %v668
          %v752 = vpack.c.b16 %v671, %v670
          %v753 = vpack.c.b16 %v673, %v672
          %v754 = vpack.c.b16 %v675, %v674
          %v755 = vpack.c.b16 %v677, %v676
          %v756 = vpack.c.b16 %v679, %v678
          %v757 = vpack.c.b16 %v681, %v680
          %v758 = vpack.c.b16 %v683, %v682
          %v759 = vpack.c.b16 %v685, %v684
          %v760 = vpack.c.b16 %v687, %v686
          %v761 = vpack.c.b16 %v689, %v688
          %v762 = vpack.c.b16 %v691, %v690
          %v763 = vpack.c.b16 %v693, %v692
          %v764 = vpack.c.b16 %v695, %v694
          %v765 = vpack.c.b16 %v697, %v696
          %v766 = vpack.c.b16 %v699, %v698
          %v767 = vpack.c.b16 %v701, %v700
          %v768 = vpack.c.b16 %v703, %v702
          %v769 = vpack.c.b16 %v705, %v704
          %834 = vmatprep.subr.bf16.mxu0 0
          %835 = vmatpush1.bf16.msra.mxu0 %v713
          %836 = vmatprep.subr.bf16.mxu0 0
          %837 = vmatpush1.bf16.msra.mxu0 %v712
          %838 = vmatprep.subr.bf16.mxu0 0
          %839 = vmatpush1.bf16.msra.mxu0 %v711
          %840 = vmatprep.subr.bf16.mxu0 0
          %841 = vmatpush1.bf16.msra.mxu0 %v710
          %842 = vmatprep.subr.bf16.mxu0 0
          %843 = vmatpush1.bf16.msra.mxu0 %v709
          %844 = vmatprep.subr.bf16.mxu0 0
          %845 = vmatpush1.bf16.msra.mxu0 %v708
          %846 = vmatprep.subr.bf16.mxu0 0
          %847 = vmatpush1.bf16.msra.mxu0 %v707
          %848 = vmatprep.subr.bf16.mxu0 0
          %849 = vmatpush1.bf16.msra.mxu0 %v706
          %850 = vmatprep.subr.bf16.mxu0 0
          %851 = vmatpush2.bf16.msra.mxu0 %v721
          %852 = vmatprep.subr.bf16.mxu0 0
          %853 = vmatpush2.bf16.msra.mxu0 %v720
          %854 = vmatprep.subr.bf16.mxu0 0
          %855 = vmatpush2.bf16.msra.mxu0 %v719
          %856 = vmatprep.subr.bf16.mxu0 0
          %857 = vmatpush2.bf16.msra.mxu0 %v718
          %858 = vmatprep.subr.bf16.mxu0 0
          %859 = vmatpush2.bf16.msra.mxu0 %v717
          %860 = vmatprep.subr.bf16.mxu0 0
          %861 = vmatpush2.bf16.msra.mxu0 %v716
          %862 = vmatprep.subr.bf16.mxu0 0
          %863 = vmatpush2.bf16.msra.mxu0 %v715
          %864 = vmatprep.subr.bf16.mxu0 0
          %865 = vmatpush2.bf16.msra.mxu0 %v714
          %866 = vmatprep.mubr.bf16.mxu0 %v315
          %867 = vmatmul.mubr.bf16.gmra.mxu0 %v314
          %v868 = vpop.f32.mrf.mxu0
          %v869 = vadd.f32 0.0, %v868
          %v870 = vpop.f32.mrf.mxu0
          %v871 = vpop.f32.mrf.mxu0
          %v872 = vadd.f32 0.0, %v871
          %v873 = vpop.f32.mrf.mxu0
          %874 = vdwg.mxu0
          %875 = vmatprep.subr.bf16.mxu0 0
          %876 = vmatpush1.bf16.msra.mxu0 %v729
          %877 = vmatprep.subr.bf16.mxu0 0
          %878 = vmatpush1.bf16.msra.mxu0 %v728
          %879 = vmatprep.subr.bf16.mxu0 0
          %880 = vmatpush1.bf16.msra.mxu0 %v727
          %881 = vmatprep.subr.bf16.mxu0 0
          %882 = vmatpush1.bf16.msra.mxu0 %v726
          %883 = vmatprep.subr.bf16.mxu0 0
          %884 = vmatpush1.bf16.msra.mxu0 %v725
          %885 = vmatprep.subr.bf16.mxu0 0
          %886 = vmatpush1.bf16.msra.mxu0 %v724
          %887 = vmatprep.subr.bf16.mxu0 0
          %888 = vmatpush1.bf16.msra.mxu0 %v723
          %889 = vmatprep.subr.bf16.mxu0 0
          %890 = vmatpush1.bf16.msra.mxu0 %v722
          %891 = vmatprep.subr.bf16.mxu0 0
          %892 = vmatpush2.bf16.msra.mxu0 %v737
          %893 = vmatprep.subr.bf16.mxu0 0
          %894 = vmatpush2.bf16.msra.mxu0 %v736
          %895 = vmatprep.subr.bf16.mxu0 0
          %896 = vmatpush2.bf16.msra.mxu0 %v735
          %897 = vmatprep.subr.bf16.mxu0 0
          %898 = vmatpush2.bf16.msra.mxu0 %v734
          %899 = vmatprep.subr.bf16.mxu0 0
          %900 = vmatpush2.bf16.msra.mxu0 %v733
          %901 = vmatprep.subr.bf16.mxu0 0
          %902 = vmatpush2.bf16.msra.mxu0 %v732
          %903 = vmatprep.subr.bf16.mxu0 0
          %904 = vmatpush2.bf16.msra.mxu0 %v731
          %905 = vmatprep.subr.bf16.mxu0 0
          %906 = vmatpush2.bf16.msra.mxu0 %v730
          %907 = vmatprep.mubr.bf16.mxu0 %v317
          %908 = vmatmul.mubr.bf16.gmra.mxu0 %v316
          %v909 = vpop.f32.mrf.mxu0
          %v910 = vadd.f32 %v869, %v909
          %v911 = vpop.f32.mrf.mxu0
          %v912 = vpop.f32.mrf.mxu0
          %v913 = vadd.f32 %v872, %v912
          %v914 = vpop.f32.mrf.mxu0
          %915 = vdwg.mxu0
          %916 = vmatprep.subr.bf16.mxu0 0
          %917 = vmatpush1.bf16.msra.mxu0 %v745
          %918 = vmatprep.subr.bf16.mxu0 0
          %919 = vmatpush1.bf16.msra.mxu0 %v744
          %920 = vmatprep.subr.bf16.mxu0 0
          %921 = vmatpush1.bf16.msra.mxu0 %v743
          %922 = vmatprep.subr.bf16.mxu0 0
          %923 = vmatpush1.bf16.msra.mxu0 %v742
          %924 = vmatprep.subr.bf16.mxu0 0
          %925 = vmatpush1.bf16.msra.mxu0 %v741
          %926 = vmatprep.subr.bf16.mxu0 0
          %927 = vmatpush1.bf16.msra.mxu0 %v740
          %928 = vmatprep.subr.bf16.mxu0 0
          %929 = vmatpush1.bf16.msra.mxu0 %v739
          %930 = vmatprep.subr.bf16.mxu0 0
          %931 = vmatpush1.bf16.msra.mxu0 %v738
          %932 = vmatprep.subr.bf16.mxu0 0
          %933 = vmatpush2.bf16.msra.mxu0 %v753
          %934 = vmatprep.subr.bf16.mxu0 0
          %935 = vmatpush2.bf16.msra.mxu0 %v752
          %936 = vmatprep.subr.bf16.mxu0 0
          %937 = vmatpush2.bf16.msra.mxu0 %v751
          %938 = vmatprep.subr.bf16.mxu0 0
          %939 = vmatpush2.bf16.msra.mxu0 %v750
          %940 = vmatprep.subr.bf16.mxu0 0
          %941 = vmatpush2.bf16.msra.mxu0 %v749
          %942 = vmatprep.subr.bf16.mxu0 0
          %943 = vmatpush2.bf16.msra.mxu0 %v748
          %944 = vmatprep.subr.bf16.mxu0 0
          %945 = vmatpush2.bf16.msra.mxu0 %v747
          %946 = vmatprep.subr.bf16.mxu0 0
          %947 = vmatpush2.bf16.msra.mxu0 %v746
          %948 = vmatprep.mubr.bf16.mxu0 %v319
          %949 = vmatmul.mubr.bf16.gmra.mxu0 %v318
          %v950 = vpop.f32.mrf.mxu0
          %v951 = vadd.f32 %v910, %v950
          %v952 = vpop.f32.mrf.mxu0
          %v953 = vpop.f32.mrf.mxu0
          %v954 = vadd.f32 %v913, %v953
          %v955 = vpop.f32.mrf.mxu0
          %956 = vdwg.mxu0
          %957 = vmatprep.subr.bf16.mxu0 0
          %958 = vmatpush1.bf16.msra.mxu0 %v761
          %959 = vmatprep.subr.bf16.mxu0 0
          %960 = vmatpush1.bf16.msra.mxu0 %v760
          %961 = vmatprep.subr.bf16.mxu0 0
          %962 = vmatpush1.bf16.msra.mxu0 %v759
          %963 = vmatprep.subr.bf16.mxu0 0
          %964 = vmatpush1.bf16.msra.mxu0 %v758
          %965 = vmatprep.subr.bf16.mxu0 0
          %966 = vmatpush1.bf16.msra.mxu0 %v757
          %967 = vmatprep.subr.bf16.mxu0 0
          %968 = vmatpush1.bf16.msra.mxu0 %v756
          %969 = vmatprep.subr.bf16.mxu0 0
          %970 = vmatpush1.bf16.msra.mxu0 %v755
          %971 = vmatprep.subr.bf16.mxu0 0
          %972 = vmatpush1.bf16.msra.mxu0 %v754
          %973 = vmatprep.subr.bf16.mxu0 0
          %974 = vmatpush2.bf16.msra.mxu0 %v769
          %975 = vmatprep.subr.bf16.mxu0 0
          %976 = vmatpush2.bf16.msra.mxu0 %v768
          %977 = vmatprep.subr.bf16.mxu0 0
          %978 = vmatpush2.bf16.msra.mxu0 %v767
          %979 = vmatprep.subr.bf16.mxu0 0
          %980 = vmatpush2.bf16.msra.mxu0 %v766
          %981 = vmatprep.subr.bf16.mxu0 0
          %982 = vmatpush2.bf16.msra.mxu0 %v765
          %983 = vmatprep.subr.bf16.mxu0 0
          %984 = vmatpush2.bf16.msra.mxu0 %v764
          %985 = vmatprep.subr.bf16.mxu0 0
          %986 = vmatpush2.bf16.msra.mxu0 %v763
          %987 = vmatprep.subr.bf16.mxu0 0
          %988 = vmatpush2.bf16.msra.mxu0 %v762
          %989 = vmatprep.mubr.bf16.mxu0 %v321
          %990 = vmatmul.mubr.bf16.gmra.mxu0 %v320
          %v991 = vpop.f32.mrf.mxu0
          %v992 = vadd.f32 %v951, %v991
          %v993 = vpop.f32.mrf.mxu0
          %v994 = vpop.f32.mrf.mxu0
          %v995 = vadd.f32 %v954, %v994
          %v996 = vpop.f32.mrf.mxu0
          %997 = vdwg.mxu0
          %v998 = vlaneseq
          %v999 = vshrl.u32 %v998, 7
          %v1000 = vadd.s32 %v999, 8
          %v1001 = vstv %s297
          %v1002 = vadd.s32 %v1001, %v999
          %v1003 = vadd.s32 %v1001, %v1000
          %vm1004 = vcmp.lt.s32.totalorder %v1002, 8
          %vm1005 = vcmp.lt.s32.totalorder %v1003, 8
          %v1006 = vsel %vm1004, 1, 0
          %v1007 = vsel %vm1005, 1, 0
          %vm1008 = vcmp.eq.s32.totalorder %v1006, 1
          %vm1009 = vcmp.eq.s32.totalorder %v1007, 1
          %v1010 = vsel %vm1008, %v992, 0.0
          %v1011 = vsel %vm1009, %v995, 0.0
          %v1012 = vld [vmem:[#allocation3] sm:$0x1]
          %v1013 = vadd.f32 %v1010, %v1011
          %v1014 = vrot.slane %v1013, 4
          %v1015 = vadd.f32 %v1013, %v1014
          %v1016 = vrot.slane %v1015, 2
          %v1017 = vadd.f32 %v1015, %v1016
          %v1018 = vrot.slane %v1017, 1
          %v1019 = vadd.f32 %v1017, %v1018
          %v1020 = vadd.f32 %v1012, %v1019
          %1021 = vst [vmem:[#allocation3] sm:$0x1] %v1020
          %v1022 = vld [vmem:[#allocation4] sm:$0x1]
          %v1023 = vmul.f32 %v1010, %v1010
          %v1024 = vmul.f32 %v1011, %v1011
          %v1025 = vadd.f32 %v1023, %v1024
          %v1026 = vrot.slane %v1025, 4
          %v1027 = vadd.f32 %v1025, %v1026
          %v1028 = vrot.slane %v1027, 2
          %v1029 = vadd.f32 %v1027, %v1028
          %v1030 = vrot.slane %v1029, 1
          %v1031 = vadd.f32 %v1029, %v1030
          %v1032 = vadd.f32 %v1022, %v1031
          %1033 = vst [vmem:[#allocation4] sm:$0x1] %v1032
          %v1034 = vpack.c.bf16 %v1011, %v1010
          %v1036 = vunpack.c.l.b16 %v1034
          %v1037 = vunpack.c.h.b16 %v1034
          %v1038 = vpack.c.b16 %v1036, %v1036
          %v1039 = vpack.c.b16 %v1037, %v1037
          %s1042 = sshra.s32 %s297, 3
          %s1043 = sand.u32 %s297, 7
          %s1044 = smul.addr %s1042, 4
          %s1045 = scalar_lea.vmem [#allocation2], %s1044
          %1046 = vst [vmem:[%s1045] sm:$0xf] %v1038
          %1047 = vst [vmem:[%s1045 + $0x4] sm:$0xf] %v1039
        $region60: #{tpu_custom_call.1} parent=35 // pred_fallthru
          _
        %p1048 = scmp.eq.s32.totalorder %s23, 1
        // Predicated region
        $region61: #{tpu_custom_call.1} parent=35 // pred_check
          %p1049 = pneg %p1048
        $region62: #{tpu_custom_call.1} parent=35 // pred_check_branch
          %1051 = sbr.rel (%p1049) target = $region64
        $region63: #{tpu_custom_call.1} parent=35 // pred_region
          %v1052 = vld [vmem:[#allocation3] sm:$0x1]
          %v1053 = vmul.f32 %v1052, 0.125
          %v1054 = vld [vmem:[#allocation4] sm:$0x1]
          %v1055 = vmul.f32 %v1054, 0.125
          %v1056 = vmul.f32 %v1053, %v1053
          %v1057 = vsub.f32 %v1055, %v1056
          %v1058 = vmax.f32 %v1057, 0.0
          %v1059 = vadd.f32 %v1058, 1e-05
          %v1060 = vrsqrt.pop %v1059
          %1061 = vst [vmem:[#allocation5] sm:$0x1] %v1053
          %v1062 = vld [vmem:[#allocation12] sm:$0xff]
          %v1063 = vld [vmem:[#allocation12 + $0x8] sm:$0xff]
          %v1064 = vld [vmem:[#allocation12 + $0x10] sm:$0xff]
          %v1065 = vld [vmem:[#allocation12 + $0x18] sm:$0xff]
          %v1066 = vld [vmem:[#allocation12 + $0x20] sm:$0xff]
          %v1067 = vld [vmem:[#allocation12 + $0x28] sm:$0xff]
          %v1068 = vld [vmem:[#allocation12 + $0x30] sm:$0xff]
          %v1069 = vld [vmem:[#allocation12 + $0x38] sm:$0xff]
          %v1070 = vld [vmem:[#allocation12 + $0x40] sm:$0xff]
          %v1071 = vld [vmem:[#allocation12 + $0x48] sm:$0xff]
          %v1072 = vld [vmem:[#allocation12 + $0x50] sm:$0xff]
          %v1073 = vld [vmem:[#allocation12 + $0x58] sm:$0xff]
          %v1074 = vld [vmem:[#allocation12 + $0x60] sm:$0xff]
          %v1075 = vld [vmem:[#allocation12 + $0x68] sm:$0xff]
          %v1076 = vld [vmem:[#allocation12 + $0x70] sm:$0xff]
          %v1077 = vld [vmem:[#allocation12 + $0x78] sm:$0xff]
          %v1079 = vlaneseq
          %v1080 = vshrl.u32 %v1079, 7
          %v1081 = vsub.s32 0, %v1080
          %v1082 = vrot.slane %v1060, %v1081
          %v1084 = vmul.f32 %v1082, %v1062
          %v1085 = vmul.f32 %v1082, %v1063
          %v1086 = vmul.f32 %v1082, %v1064
          %v1087 = vmul.f32 %v1082, %v1065
          %v1088 = vmul.f32 %v1082, %v1066
          %v1089 = vmul.f32 %v1082, %v1067
          %v1090 = vmul.f32 %v1082, %v1068
          %v1091 = vmul.f32 %v1082, %v1069
          %v1092 = vmul.f32 %v1082, %v1070
          %v1093 = vmul.f32 %v1082, %v1071
          %v1094 = vmul.f32 %v1082, %v1072
          %v1095 = vmul.f32 %v1082, %v1073
          %v1096 = vmul.f32 %v1082, %v1074
          %v1097 = vmul.f32 %v1082, %v1075
          %v1098 = vmul.f32 %v1082, %v1076
          %v1099 = vmul.f32 %v1082, %v1077
          %1100 = vxpose.xlu0.b32.start [1/16] %v1084, 128
          %1101 = vxpose.xlu0.b32.cont [2/16] %v1085, 128
          %1102 = vxpose.xlu0.b32.cont [3/16] %v1086, 128
          %1103 = vxpose.xlu0.b32.cont [4/16] %v1087, 128
          %1104 = vxpose.xlu0.b32.cont [5/16] %v1088, 128
          %1105 = vxpose.xlu0.b32.cont [6/16] %v1089, 128
          %1106 = vxpose.xlu0.b32.cont [7/16] %v1090, 128
          %1107 = vxpose.xlu0.b32.cont [8/16] %v1091, 128
          %1108 = vxpose.xlu0.b32.cont [9/16] %v1092, 128
          %1109 = vxpose.xlu0.b32.cont [10/16] %v1093, 128
          %1110 = vxpose.xlu0.b32.cont [11/16] %v1094, 128
          %1111 = vxpose.xlu0.b32.cont [12/16] %v1095, 128
          %1112 = vxpose.xlu0.b32.cont [13/16] %v1096, 128
          %1113 = vxpose.xlu0.b32.cont [14/16] %v1097, 128
          %1114 = vxpose.xlu0.b32.cont [15/16] %v1098, 128
          %1115 = vxpose.xlu0.b32.end [16/16] %v1099, 128
          %v1116 = vpop.trf.xlu0
          %v1117 = vpop.trf.xlu0
          %v1118 = vpop.trf.xlu0
          %v1119 = vpop.trf.xlu0
          %v1120 = vpop.trf.xlu0
          %v1121 = vpop.trf.xlu0
          %v1122 = vpop.trf.xlu0
          %v1123 = vpop.trf.xlu0
          %v1124 = vpop.trf.xlu0
          %v1125 = vpop.trf.xlu0
          %v1126 = vpop.trf.xlu0
          %v1127 = vpop.trf.xlu0
          %v1128 = vpop.trf.xlu0
          %v1129 = vpop.trf.xlu0
          %v1130 = vpop.trf.xlu0
          %v1131 = vpop.trf.xlu0
          %v1132 = vpack.c.bf16 %v1117, %v1116
          %v1133 = vpack.c.bf16 %v1119, %v1118
          %v1134 = vpack.c.bf16 %v1121, %v1120
          %v1135 = vpack.c.bf16 %v1123, %v1122
          %v1136 = vpack.c.bf16 %v1125, %v1124
          %v1137 = vpack.c.bf16 %v1127, %v1126
          %v1138 = vpack.c.bf16 %v1129, %v1128
          %v1139 = vpack.c.bf16 %v1131, %v1130
          %v1148 = vunpack.c.l.b16 %v1132
          %v1149 = vunpack.c.h.b16 %v1132
          %v1150 = vunpack.c.l.b16 %v1133
          %v1151 = vunpack.c.h.b16 %v1133
          %v1152 = vunpack.c.l.b16 %v1134
          %v1153 = vunpack.c.h.b16 %v1134
          %v1154 = vunpack.c.l.b16 %v1135
          %v1155 = vunpack.c.h.b16 %v1135
          %v1156 = vunpack.c.l.b16 %v1136
          %v1157 = vunpack.c.h.b16 %v1136
          %v1158 = vunpack.c.l.b16 %v1137
          %v1159 = vunpack.c.h.b16 %v1137
          %v1160 = vunpack.c.l.b16 %v1138
          %v1161 = vunpack.c.h.b16 %v1138
          %v1162 = vunpack.c.l.b16 %v1139
          %v1163 = vunpack.c.h.b16 %v1139
          %v1164 = vpack.c.b16 %v1148, %v1148
          %v1165 = vpack.c.b16 %v1149, %v1149
          %v1166 = vpack.c.b16 %v1150, %v1150
          %v1167 = vpack.c.b16 %v1151, %v1151
          %v1168 = vpack.c.b16 %v1152, %v1152
          %v1169 = vpack.c.b16 %v1153, %v1153
          %v1170 = vpack.c.b16 %v1154, %v1154
          %v1171 = vpack.c.b16 %v1155, %v1155
          %v1172 = vpack.c.b16 %v1156, %v1156
          %v1173 = vpack.c.b16 %v1157, %v1157
          %v1174 = vpack.c.b16 %v1158, %v1158
          %v1175 = vpack.c.b16 %v1159, %v1159
          %v1176 = vpack.c.b16 %v1160, %v1160
          %v1177 = vpack.c.b16 %v1161, %v1161
          %v1178 = vpack.c.b16 %v1162, %v1162
          %v1179 = vpack.c.b16 %v1163, %v1163
          %1196 = vst [vmem:[#allocation6] sm:$0xf] %v1164
          %1197 = vst [vmem:[#allocation6 + $0x4] sm:$0xf] %v1165
          %1198 = vst [vmem:[#allocation6 + $0x8] sm:$0xf] %v1166
          %1199 = vst [vmem:[#allocation6 + $0xc] sm:$0xf] %v1167
          %1200 = vst [vmem:[#allocation6 + $0x10] sm:$0xf] %v1168
          %1201 = vst [vmem:[#allocation6 + $0x14] sm:$0xf] %v1169
          %1202 = vst [vmem:[#allocation6 + $0x18] sm:$0xf] %v1170
          %1203 = vst [vmem:[#allocation6 + $0x1c] sm:$0xf] %v1171
          %1204 = vst [vmem:[#allocation6 + $0x20] sm:$0xf] %v1172
          %1205 = vst [vmem:[#allocation6 + $0x24] sm:$0xf] %v1173
          %1206 = vst [vmem:[#allocation6 + $0x28] sm:$0xf] %v1174
          %1207 = vst [vmem:[#allocation6 + $0x2c] sm:$0xf] %v1175
          %1208 = vst [vmem:[#allocation6 + $0x30] sm:$0xf] %v1176
          %1209 = vst [vmem:[#allocation6 + $0x34] sm:$0xf] %v1177
          %1210 = vst [vmem:[#allocation6 + $0x38] sm:$0xf] %v1178
          %1211 = vst [vmem:[#allocation6 + $0x3c] sm:$0xf] %v1179
        $region64: #{tpu_custom_call.1} parent=35 // pred_fallthru
          _
        %p1212 = scmp.ge.s32.totalorder %s23, 1
        // Predicated region
        $region65: #{tpu_custom_call.1} parent=35 // pred_check
          %p1213 = pneg %p1212
        $region66: #{tpu_custom_call.1} parent=35 // pred_check_branch
          %1215 = sbr.rel (%p1213) target = $region68
        $region67: #{tpu_custom_call.1} parent=35 // pred_region
          %s1216 = ssub.s32 %s23, 1
          %s1217 = smul.u32 %s1216, 16
          %v1218 = vld [vmem:[#allocation5] sm:$0x1]
          %v1219 = vld [vmem:[#allocation6] sm:$0xf]
          %v1220 = vld [vmem:[#allocation6 + $0x4] sm:$0xf]
          %v1221 = vld [vmem:[#allocation6 + $0x8] sm:$0xf]
          %v1222 = vld [vmem:[#allocation6 + $0xc] sm:$0xf]
          %v1223 = vld [vmem:[#allocation6 + $0x10] sm:$0xf]
          %v1224 = vld [vmem:[#allocation6 + $0x14] sm:$0xf]
          %v1225 = vld [vmem:[#allocation6 + $0x18] sm:$0xf]
          %v1226 = vld [vmem:[#allocation6 + $0x1c] sm:$0xf]
          %v1227 = vld [vmem:[#allocation6 + $0x20] sm:$0xf]
          %v1228 = vld [vmem:[#allocation6 + $0x24] sm:$0xf]
          %v1229 = vld [vmem:[#allocation6 + $0x28] sm:$0xf]
          %v1230 = vld [vmem:[#allocation6 + $0x2c] sm:$0xf]
          %v1231 = vld [vmem:[#allocation6 + $0x30] sm:$0xf]
          %v1232 = vld [vmem:[#allocation6 + $0x34] sm:$0xf]
          %v1233 = vld [vmem:[#allocation6 + $0x38] sm:$0xf]
          %v1234 = vld [vmem:[#allocation6 + $0x3c] sm:$0xf]
          %v1235 = vld [vmem:[#allocation13] sm:$0x1]
          %v1236 = vld [vmem:[#allocation13 + $0x1] sm:$0x1]
          %v1237 = vld [vmem:[#allocation13 + $0x2] sm:$0x1]
          %s1238 = sshra.s32 %s1217, 3
          %s1239 = sand.u32 %s1217, 7
          %s1240 = smul.addr %s1238, 4
          %s1241 = scalar_lea.vmem [#allocation2], %s1240
          %v1242 = vld [vmem:[%s1241] sm:$0xf]
          %v1243 = vld [vmem:[%s1241 + $0x4] sm:$0xf]
          %v1244 = vunpack.c.l.bf16 %v1242
          %v1245 = vunpack.c.l.bf16 %v1243
          %v1247 = vlaneseq
          %v1248 = vshrl.u32 %v1247, 7
          %v1249 = vsub.s32 0, %v1248
          %v1250 = vrot.slane %v1218, %v1249
          %v1252 = vsub.f32 %v1244, %v1250
          %v1253 = vsub.f32 %v1245, %v1250
          %vm1254 = vcmp.gt.f32.partialorder %v1252, 0.0
          %vm1255 = vcmp.gt.f32.partialorder %v1253, 0.0
          %v1256 = vmul.f32 %v1252, 0.2
          %v1257 = vmul.f32 %v1253, 0.2
          %v1258 = vsel %vm1254, %v1252, %v1256
          %v1259 = vsel %vm1255, %v1253, %v1257
          %v1260 = vpack.c.bf16 %v1259, %v1258
          %v1261 = vlaneseq
          %v1262 = vshrl.u32 %v1261, 7
          %v1263 = vsub.s32 0, %v1262
          %v1264 = vrot.slane %v1235, %v1263
          %v1281 = vunpack.c.l.b16 %v1219
          %v1282 = vunpack.c.l.b16 %v1220
          %v1283 = vunpack.c.l.b16 %v1221
          %v1284 = vunpack.c.l.b16 %v1222
          %v1285 = vunpack.c.l.b16 %v1223
          %v1286 = vunpack.c.l.b16 %v1224
          %v1287 = vunpack.c.l.b16 %v1225
          %v1288 = vunpack.c.l.b16 %v1226
          %v1289 = vunpack.c.l.b16 %v1227
          %v1290 = vunpack.c.l.b16 %v1228
          %v1291 = vunpack.c.l.b16 %v1229
          %v1292 = vunpack.c.l.b16 %v1230
          %v1293 = vunpack.c.l.b16 %v1231
          %v1294 = vunpack.c.l.b16 %v1232
          %v1295 = vunpack.c.l.b16 %v1233
          %v1296 = vunpack.c.l.b16 %v1234
          %v1297 = vpack.c.b16 %v1282, %v1281
          %v1298 = vpack.c.b16 %v1284, %v1283
          %v1299 = vpack.c.b16 %v1286, %v1285
          %v1300 = vpack.c.b16 %v1288, %v1287
          %v1301 = vpack.c.b16 %v1290, %v1289
          %v1302 = vpack.c.b16 %v1292, %v1291
          %v1303 = vpack.c.b16 %v1294, %v1293
          %v1304 = vpack.c.b16 %v1296, %v1295
          %1313 = vmatprep.subr.bf16.mxu0 0
          %1314 = vmatpush1.bf16.msra.mxu0 %v1304
          %1315 = vmatprep.subr.bf16.mxu0 0
          %1316 = vmatpush1.bf16.msra.mxu0 %v1303
          %1317 = vmatprep.subr.bf16.mxu0 0
          %1318 = vmatpush1.bf16.msra.mxu0 %v1302
          %1319 = vmatprep.subr.bf16.mxu0 0
          %1320 = vmatpush1.bf16.msra.mxu0 %v1301
          %1321 = vmatprep.subr.bf16.mxu0 0
          %1322 = vmatpush1.bf16.msra.mxu0 %v1300
          %1323 = vmatprep.subr.bf16.mxu0 0
          %1324 = vmatpush1.bf16.msra.mxu0 %v1299
          %1325 = vmatprep.subr.bf16.mxu0 0
          %1326 = vmatpush1.bf16.msra.mxu0 %v1298
          %1327 = vmatprep.subr.bf16.mxu0 0
          %1328 = vmatpush1.bf16.msra.mxu0 %v1297
          %1329 = vmatprep.subr.bf16.mxu0 0
          %1330 = vmatpush2.bf16.msra.mxu0 0
          %1331 = vmatprep.subr.bf16.mxu0 0
          %1332 = vmatpush2.bf16.msra.mxu0 0
          %1333 = vmatprep.subr.bf16.mxu0 0
          %1334 = vmatpush2.bf16.msra.mxu0 0
          %1335 = vmatprep.subr.bf16.mxu0 0
          %1336 = vmatpush2.bf16.msra.mxu0 0
          %1337 = vmatprep.subr.bf16.mxu0 0
          %1338 = vmatpush2.bf16.msra.mxu0 0
          %1339 = vmatprep.subr.bf16.mxu0 0
          %1340 = vmatpush2.bf16.msra.mxu0 0
          %1341 = vmatprep.subr.bf16.mxu0 0
          %1342 = vmatpush2.bf16.msra.mxu0 0
          %1343 = vmatprep.subr.bf16.mxu0 0
          %1344 = vmatpush2.bf16.msra.mxu0 0
          %1345 = vmatprep.mubr.bf16.mxu0 0
          %1346 = vmatmul.mubr.bf16.gmra.mxu0 %v1260
          %v1347 = vpop.f32.mrf.mxu0
          %v1348 = vadd.f32 %v1264, %v1347
          %v1349 = vpop.f32.mrf.mxu0
          %v1350 = vpop.f32.mrf.mxu0
          %v1351 = vadd.f32 %v1264, %v1350
          %v1352 = vpop.f32.mrf.mxu0
          %1353 = vdwg.mxu0
          %v1354 = vlaneseq
          %v1355 = vshrl.u32 %v1354, 7
          %v1356 = vsub.s32 0, %v1355
          %v1357 = vrot.slane %v1236, %v1356
          %v1358 = vadd.f32 %v1348, %v1357
          %v1359 = vadd.f32 %v1351, %v1357
          %1360 = vmax.xlane.f32.xlu0 %v1358
          %v1361 = vpop.xlane.xlu0 %1360
          %1362 = vmax.xlane.f32.xlu0 %v1359
          %v1363 = vpop.xlane.xlu0 %1362
          %v1364 = vsub.f32 %v1358, %v1361
          %v1365 = vsub.f32 %v1359, %v1363
          %v1366 = vmul.f32 %v1364, 1.442695
          %v1367 = vpow.pop %v1366
          %v1368 = vmul.f32 %v1365, 1.442695
          %v1369 = vpow.pop %v1368
          %1370 = vadd.xlane.f32.xlu0 %v1367
          %v1371 = vpop.xlane.xlu0 %1370
          %1372 = vadd.xlane.f32.xlu0 %v1369
          %v1373 = vpop.xlane.xlu0 %1372
          %v1374 = vrcp.pop %v1371
          %v1375 = vmul.f32 1.0, %v1374
          %v1376 = vrcp.pop %v1373
          %v1377 = vmul.f32 1.0, %v1376
          %v1378 = vmul.f32 %v1367, %v1375
          %v1379 = vmul.f32 %v1369, %v1377
          %v1380 = vlaneseq
          %v1381 = vshrl.u32 %v1380, 7
          %v1382 = vsub.s32 0, %v1381
          %v1383 = vrot.slane %v1237, %v1382
          %v1384 = vmul.f32 %v1348, %v1383
          %v1385 = vmul.f32 %v1351, %v1383
          %v1386 = vadd.f32 %v1378, %v1384
          %v1387 = vadd.f32 %v1379, %v1385
          %1388 = vst [vmem:[%s275] sm:$0xff] %v1386
          %1389 = vst [vmem:[%s275 + $0x8] sm:$0xff] %v1387
        $region68: #{tpu_custom_call.1} parent=35 // pred_fallthru
          _
        %s1390 = sand.u32 %s130, 1
        %s1391 = scalar_lea.sflag [#allocation9], %s1390
        %s1392 = sand.u32 %s130, 1
        %s1393 = smul.addr %s1392, 16
        %s1394 = scalar_lea.vmem [#allocation15], %s1393
        // Predicated region
        $region69: #{tpu_custom_call.1} parent=35 // pred_check
          %p1395 = pneg %p140
        $region70: #{tpu_custom_call.1} parent=35 // pred_check_branch
          %1397 = sbr.rel (%p1395) target = $region72
        $region71: #{tpu_custom_call.1} parent=35 // pred_region
          %s1398 = ssub.s32 %s23, 1
          %p1399 = scmp.gt.s32.totalorder %s1398, 0
          %s1400 = scalar_select %p1399, %s1398, 0
          %s1401 = smul.u32 2, %s1400
          %s1403 = ssub.s32 256, 256
          %1404 = vsyncadd %s1391, %s1403
          %s1405 = smul.addr %s1401, 128
          %s1406 = scalar_lea.hbm %s4, %s1405
          %s1407 = sshll.u32 %s1394, 4
          %s1408 = int_to_ptr.vmem [resolvable:$true] %s1407
          %1413 = dma.vmem_to_hbm [thread:$0]  %s1408, 256, %s1406, %s1391, 128, 128, 8
        $region72: #{tpu_custom_call.1} parent=35 // pred_fallthru
          _
      $region36: #{tpu_custom_call.1} parent=5 // pred_fallthru
        _
      %p1414 = scmp.le.s32.totalorder 2, %s18
      // Predicated region
      $region73: #{tpu_custom_call.1} parent=5 // pred_check
        %p1415 = pneg %p1414
      $region74: #{tpu_custom_call.1} parent=5 // pred_check_branch
        %1417 = sbr.rel (%p1415) target = $region76
      $region75: #{tpu_custom_call.1} parent=5 // pred_region
        %s1418 = ssub.s32 %s18, 2
        // Predicated region
        $region77: #{tpu_custom_call.1} parent=75 // pred_check
          %p1419 = pneg %p146
        $region78: #{tpu_custom_call.1} parent=75 // pred_check_branch
          %1421 = sbr.rel (%p1419) target = $region80
        $region79: #{tpu_custom_call.1} parent=75 // pred_region
          %s1422 = sand.u32 %s131, 1
          %s1423 = scalar_lea.sflag [#allocation9], %s1422
          %s1424 = sand.u32 %s131, 1
          %s1425 = smul.addr %s1424, 16
          %s1426 = scalar_lea.vmem [#allocation15], %s1425
          %1427 = dma.done %s1423, 256
        $region80: #{tpu_custom_call.1} parent=75 // pred_fallthru
          _
      $region76: #{tpu_custom_call.1} parent=5 // pred_fallthru
        _
    $region6: #{tpu_custom_call.1} parent=1 // loop_footer
      %s22 = sadd.s32 1, %s18
    $region7: #{tpu_custom_call.1} parent=1 // loop_footer_branch
      %17 = sbr.rel target = $region3
    $region8: #{tpu_custom_call.1} parent=1 // loop_exit
      _
    %1428 = vsyncpa [#allocation8], 1
    %s1429 = scalar_lea.sflag [#allocation8], 1
    %1430 = vsyncpa %s1429, 1
    %1431 = vsyncpa [#allocation11], 1
    %1432 = vsyncpa [#allocation14], 1
    %1433 = vsyncpa [#allocation9], 1
    %s1434 = scalar_lea.sflag [#allocation9], 1
    %1435 = vsyncpa %s1434, 1

</llo_original>
